<compile_context>
chip_gen: v5e
topology: v5e:2x2
jax: 0.10.0
libtpu: 0.0.40
codegen_flags: <defaults>
</compile_context>

<pallas_src>
import functools

import jax
import jax.numpy as jnp
from jax import lax
from jax.experimental import pallas as pl
from jax.experimental.pallas import tpu as pltpu


def _round_up(n, m):
    return (n + m - 1) // m * m


# --------------------------------------------------------------------------
# Kernel
# --------------------------------------------------------------------------
def _model_kernel(x_ref,                 # (TB, C, THW)   input chunk
                  wa1_ref, ba1_ref,      # (C, C//4), (1, C//4)   spectral attn squeeze
                  wa2_ref, ba2_ref,      # (C//4, C), (1, C)      spectral attn excite
                  we_ref, be_ref,        # (C, E),    (1, E)      embedding projection
                  w1_ref, b1_ref,        # (E, M),    (1, M)      classifier hidden
                  w2_ref, b2_ref,        # (M, Kp),   (1, Kp)     classifier out (lane-padded)
                  out_ref,               # (TB, Kp)
                  acc_ref,               # (TB, C) f32 scratch: streamed spatial sum
                  *, hw, thw, m_tile):
    j = pl.program_id(1)
    n_hw = pl.num_programs(1)

    @pl.when(j == 0)
    def _init():
        acc_ref[...] = jnp.zeros_like(acc_ref)

    chunk = x_ref[...].astype(jnp.float32)           # (TB, C, THW)

    # ---- encoder: streamed spatial sum -------------------------------------
    if hw % thw == 0:
        acc_ref[...] += jnp.sum(chunk, axis=-1)
    else:
        # Ragged final HW chunk: mask out-of-range lanes before reducing.
        @pl.when(j != n_hw - 1)
        def _full():
            acc_ref[...] += jnp.sum(chunk, axis=-1)

        @pl.when(j == n_hw - 1)
        def _tail():
            lane = lax.broadcasted_iota(jnp.int32, chunk.shape, 2)
            valid = hw - j * thw
            masked = jnp.where(lane < valid, chunk, 0.0)
            acc_ref[...] += jnp.sum(masked, axis=-1)

    # ---- epilogue at the last HW step --------------------------------------
    @pl.when(j == n_hw - 1)
    def _finish():
        s = acc_ref[...] * (1.0 / hw)                 # (TB, C) spatial mean

        # encoder: spectral SE attention with residual scaling
        h = jnp.dot(s, wa1_ref[...], preferred_element_type=jnp.float32) + ba1_ref[...]
        h = jnp.maximum(h, 0.0)
        a = jnp.dot(h, wa2_ref[...], preferred_element_type=jnp.float32) + ba2_ref[...]
        a = jax.nn.sigmoid(a)
        z = s * (1.0 + a)

        # encoder: embedding projection
        emb = jnp.dot(z, we_ref[...], preferred_element_type=jnp.float32) + be_ref[...]
        emb = jnp.maximum(emb, 0.0)                   # (TB, E)

        # decoder: deep_classfier MLP, tiled along the 4096-wide hidden dim
        # so no (TB, M) intermediate is ever resident in VMEM.
        m_total = w1_ref.shape[1]
        out = jnp.zeros((emb.shape[0], out_ref.shape[-1]), jnp.float32)
        for m0 in range(0, m_total, m_tile):
            m1 = min(m0 + m_tile, m_total)
            hid = jnp.dot(emb, w1_ref[:, m0:m1],
                          preferred_element_type=jnp.float32) + b1_ref[:, m0:m1]
            hid = jnp.maximum(hid, 0.0)
            out = out + jnp.dot(hid, w2_ref[m0:m1, :],
                                preferred_element_type=jnp.float32)

        out_ref[...] = (out + b2_ref[...]).astype(out_ref.dtype)


# --------------------------------------------------------------------------
# Tile / budget selection
# --------------------------------------------------------------------------
def _vmem_limit_bytes():
    """Generation-aware scoped-VMEM limit (~96-108 MiB v5e/v6e, ~54 MiB v7x)."""
    try:
        cap = pltpu.get_tpu_info().vmem_capacity_bytes
    except Exception:
        cap = 64 * 1024 * 1024            # conservative (v7x per-TC physical)
    return max(32 << 20, min(int(cap * 0.85), cap - (8 << 20)))


def _pick_hw_tile(hw):
    """Lane-dense HW chunk: full extent if small, else a 128-multiple <= 512.

    The ragged final chunk (when THW does not divide HW) is masked in-kernel,
    so no divisibility is required and vregs never pad past the chunk width.
    """
    if hw <= 128:
        return hw
    if hw % 128 == 0:
        return min(hw, 512)
    return min((hw // 128) * 128, 512)


def _pick_batch_tile(B, C, THW, E, m_tile, K_pad, x_itemsize,
                     weight_bytes, vmem_limit, batch_tile_cap):
    """Largest 8-aligned batch tile such that 2*x_block + weights + epilogue
    working set fits ~0.7 * vmem_limit; >=2 tiles when B >= 16 (v7x megacore)."""
    budget = int(vmem_limit * 0.7)
    per_row_x = 2 * C * THW * x_itemsize                      # double-buffered x block
    c_pad = _round_up(C, 128)
    e_pad = _round_up(E, 128)
    per_row_tmp = 4 * (4 * c_pad + e_pad + m_tile + K_pad)    # acc + epilogue temps (f32)
    avail = budget - 2 * weight_bytes                          # weights double-buffered
    tb_max = max(1, avail // (per_row_x + per_row_tmp))
    tb_cap = max(1, min(tb_max, batch_tile_cap))

    if B <= tb_cap:
        if B >= 16:
            # split into >=2 tiles so both v7x TensorCores get a batch tile
            return min(_round_up(-(-B // 2), 8), tb_cap)
        return B                                               # tile == full dim
    return max(8, (tb_cap // 8) * 8)


# --------------------------------------------------------------------------
# Wrapper
# --------------------------------------------------------------------------
def contrastive_model_forward(x, params, *, batch_tile_cap=512, m_tile=1024):
    """x: (B, C_spec, H, W) or (B, 1, C_spec, H, W).  Returns logits (B, out_classes).

    x is streamed in its stored dtype (pass bf16 if the producer stores bf16);
    no wrapper-side cast or pad copies are made.
    """
    if x.ndim == 5:                      # module's 5-D branch (channel dim == 1)
        x = x[:, 0]
    B, C, H, W = x.shape
    HW = H * W
    x3 = x.reshape(B, C, HW)             # metadata-only reshape, no dtype cast

    (wa1, ba1, wa2, ba2, we, be, w1, b1, w2, b2) = params
    E = we.shape[1]
    M = w1.shape[1]
    K = w2.shape[1]

    # Lane-dense output: pad the classifier head to a multiple of 128 lanes.
    K_pad = _round_up(K, 128)
    w2p = jnp.pad(w2, ((0, 0), (0, K_pad - K))) if K_pad != K else w2
    b2p = jnp.pad(b2, ((0, 0), (0, K_pad - K))) if K_pad != K else b2

    m_tile = min(m_tile, M)
    THW = _pick_hw_tile(HW)
    vmem_limit = _vmem_limit_bytes()

    weights = (wa1, ba1, wa2, ba2, we, be, w1, b1, w2p, b2p)
    weight_bytes = sum(int(w.size) * w.dtype.itemsize for w in weights)

    TB = _pick_batch_tile(B, C, THW, E, m_tile, K_pad, x3.dtype.itemsize,
                          weight_bytes, vmem_limit, batch_tile_cap)

    grid = (pl.cdiv(B, TB), pl.cdiv(HW, THW))

    x_spec = pl.BlockSpec((TB, C, THW), lambda i, j: (i, 0, j))
    const = lambda arr: pl.BlockSpec(arr.shape, lambda i, j: (0, 0))
    out_spec = pl.BlockSpec((TB, K_pad), lambda i, j: (i, 0))

    kernel = functools.partial(_model_kernel, hw=HW, thw=THW, m_tile=m_tile)

    out = pl.pallas_call(
        kernel,
        out_shape=jax.ShapeDtypeStruct((B, K_pad), jnp.float32),
        grid=grid,
        in_specs=[x_spec] + [const(w) for w in weights],
        out_specs=out_spec,
        scratch_shapes=[pltpu.VMEM((TB, C), jnp.float32)],
        compiler_params=pltpu.CompilerParams(
            # batch tiles shard across TensorCores (v7x megacore); HW is the
            # streamed reduction axis.
            dimension_semantics=("parallel", "arbitrary"),
            vmem_limit_bytes=vmem_limit),
    )(x3, *weights)

    return out[:, :K]


# --------------------------------------------------------------------------
# Synthetic params + pure-JAX reference
# --------------------------------------------------------------------------
def init_params(key, c_spec, out_embedding=24, out_classes=8, mid_channels=4096):
    """Deterministic synthetic parameters (no checkpoint load)."""
    c_red = max(c_spec // 4, 1)
    ks = jax.random.split(key, 5)

    def lin(k, fan_in, fan_out):
        scale = 1.0 / jnp.sqrt(jnp.float32(fan_in))
        w = jax.random.uniform(k, (fan_in, fan_out), jnp.float32, -scale, scale)
        b = jnp.zeros((1, fan_out), jnp.float32)
        return w, b

    wa1, ba1 = lin(ks[0], c_spec, c_red)
    wa2, ba2 = lin(ks[1], c_red, c_spec)
    we, be = lin(ks[2], c_spec, out_embedding)
    w1, b1 = lin(ks[3], out_embedding, mid_channels)
    w2, b2 = lin(ks[4], mid_channels, out_classes)
    return (wa1, ba1, wa2, ba2, we, be, w1, b1, w2, b2)


def reference_forward(x, params):
    """Pure-JAX reference for the same simplified forward (f32 math)."""
    (wa1, ba1, wa2, ba2, we, be, w1, b1, w2, b2) = params
    B, C, H, W = x.shape
    s = jnp.mean(x.reshape(B, C, H * W).astype(jnp.float32), axis=-1)
    h = jnp.maximum(s @ wa1 + ba1, 0.0)
    a = jax.nn.sigmoid(h @ wa2 + ba2)
    z = s * (1.0 + a)
    emb = jnp.maximum(z @ we + be, 0.0)
    hid = jnp.maximum(emb @ w1 + b1, 0.0)
    return hid @ w2 + b2


# --------------------------------------------------------------------------
# Demo / self-test
# --------------------------------------------------------------------------
if __name__ == "__main__":
    OUT_EMB, OUT_CLASSES, MID = 24, 8, 4096

    def run_case(kx, kp, B, C, H, W, dtype=jnp.float32, tol=2e-3):
        x = jax.random.normal(kx, (B, C, H, W), jnp.float32)
        params = init_params(kp, C, OUT_EMB, OUT_CLASSES, MID)
        x_in = x.astype(dtype)                     # "producer-stored" dtype
        out = jax.block_until_ready(contrastive_model_forward(x_in, params))
        ref = reference_forward(x_in.astype(jnp.float32), params)
        assert out.shape == (B, OUT_CLASSES), out.shape
        assert jnp.allclose(out, ref, atol=tol, rtol=tol), (
            f"mismatch B={B} C={C} H={H} W={W} dtype={dtype}")

    key = jax.random.PRNGKey(0)
    k1, k2, k3, k4, k5, k6 = jax.random.split(key, 6)

    # 1) small f32 case, single batch tile, single HW step
    run_case(k1, k2, 2, 16, 8, 8)
    # 2) bf16-stored input (no wrapper-side cast pass; f32 accumulation)
    run_case(k3, k4, 2, 16, 8, 8, dtype=jnp.bfloat16, tol=1e-2)
    # 3) ragged shapes: HW=169 -> THW=128 + masked tail; B=20 -> 2 batch tiles
    run_case(k5, k6, 20, 16, 13, 13)

    print("KERNEL_OK")
</pallas_src>

<mosaic_0001>
module attributes {stable_mosaic.version = 11 : i64} {
  func.func @_model_kernel(%arg0: i32, %arg1: i32, %arg2: memref<2x16x64xf32, #tpu.memory_space<vmem>>, %arg3: memref<16x4xf32, #tpu.memory_space<vmem>>, %arg4: memref<1x4xf32, #tpu.memory_space<vmem>>, %arg5: memref<4x16xf32, #tpu.memory_space<vmem>>, %arg6: memref<1x16xf32, #tpu.memory_space<vmem>>, %arg7: memref<16x24xf32, #tpu.memory_space<vmem>>, %arg8: memref<1x24xf32, #tpu.memory_space<vmem>>, %arg9: memref<24x4096xf32, #tpu.memory_space<vmem>>, %arg10: memref<1x4096xf32, #tpu.memory_space<vmem>>, %arg11: memref<4096x128xf32, #tpu.memory_space<vmem>>, %arg12: memref<1x128xf32, #tpu.memory_space<vmem>>, %arg13: memref<2x128xf32, #tpu.memory_space<vmem>>, %arg14: memref<2x16xf32, #tpu.memory_space<vmem>>) attributes {dimension_semantics = [#tpu.dimension_semantics<parallel>, #tpu.dimension_semantics<arbitrary>], iteration_bounds = array<i64: 1, 1>, scalar_prefetch = 0 : i64, scratch_operands = 1 : i64, tpu.core_type = #tpu.core_type<tc>, window_params = [{transform_indices = @transform_0, window_bounds = array<i64: 2, 16, 64>}, {pipeline_mode = #tpu.pipeline_mode<synchronous>, transform_indices = @transform_1, window_bounds = array<i64: 16, 4>}, {pipeline_mode = #tpu.pipeline_mode<synchronous>, transform_indices = @transform_2, window_bounds = array<i64: 1, 4>}, {pipeline_mode = #tpu.pipeline_mode<synchronous>, transform_indices = @transform_3, window_bounds = array<i64: 4, 16>}, {pipeline_mode = #tpu.pipeline_mode<synchronous>, transform_indices = @transform_4, window_bounds = array<i64: 1, 16>}, {pipeline_mode = #tpu.pipeline_mode<synchronous>, transform_indices = @transform_5, window_bounds = array<i64: 16, 24>}, {pipeline_mode = #tpu.pipeline_mode<synchronous>, transform_indices = @transform_6, window_bounds = array<i64: 1, 24>}, {pipeline_mode = #tpu.pipeline_mode<synchronous>, transform_indices = @transform_7, window_bounds = array<i64: 24, 4096>}, {pipeline_mode = #tpu.pipeline_mode<synchronous>, transform_indices = @transform_8, window_bounds = array<i64: 1, 4096>}, {pipeline_mode = #tpu.pipeline_mode<synchronous>, transform_indices = @transform_9, window_bounds = array<i64: 4096, 128>}, {pipeline_mode = #tpu.pipeline_mode<synchronous>, transform_indices = @transform_10, window_bounds = array<i64: 1, 128>}, {transform_indices = @transform_11, window_bounds = array<i64: 2, 128>}]} {
    %c0_i32 = arith.constant 0 : i32
    %0 = arith.cmpi eq, %arg1, %c0_i32 : i32
    %1 = arith.extui %0 : i1 to i32
    %c0_i32_0 = arith.constant 0 : i32
    %2 = arith.cmpi ne, %1, %c0_i32_0 : i32
    scf.if %2 {
      %cst_9 = arith.constant 0.000000e+00 : f32
      %11 = vector.broadcast %cst_9 : f32 to vector<2x16xf32>
      %c0_10 = arith.constant 0 : index
      %c0_11 = arith.constant 0 : index
      %12 = vector.load %arg14[%c0_10, %c0_11] : memref<2x16xf32, #tpu.memory_space<vmem>>, vector<2x16xf32>
      tpu.vector_store %arg14[%c0_10, %c0_11], %11 {strides = array<i32>} : memref<2x16xf32, #tpu.memory_space<vmem>>, vector<2x16xf32>,
    } else {
    }
    %c0 = arith.constant 0 : index
    %c0_1 = arith.constant 0 : index
    %c0_2 = arith.constant 0 : index
    %3 = vector.load %arg2[%c0, %c0_1, %c0_2] : memref<2x16x64xf32, #tpu.memory_space<vmem>>, vector<2x16x64xf32>
    %c0_3 = arith.constant 0 : index
    %c0_4 = arith.constant 0 : index
    %4 = vector.load %arg14[%c0_3, %c0_4] : memref<2x16xf32, #tpu.memory_space<vmem>>, vector<2x16xf32>
    %cst = arith.constant dense<0.000000e+00> : vector<2x16xf32>
    %5 = vector.multi_reduction <add>, %3, %cst [2] : vector<2x16x64xf32> to vector<2x16xf32>
    %6 = arith.addf %4, %5 : vector<2x16xf32>
    %c0_5 = arith.constant 0 : index
    %c0_6 = arith.constant 0 : index
    %7 = vector.load %arg14[%c0_5, %c0_6] : memref<2x16xf32, #tpu.memory_space<vmem>>, vector<2x16xf32>
    tpu.vector_store %arg14[%c0_5, %c0_6], %6 {strides = array<i32>} : memref<2x16xf32, #tpu.memory_space<vmem>>, vector<2x16xf32>,
    %c0_i32_7 = arith.constant 0 : i32
    %8 = arith.cmpi eq, %arg1, %c0_i32_7 : i32
    %9 = arith.extui %8 : i1 to i32
    %c0_i32_8 = arith.constant 0 : i32
    %10 = arith.cmpi ne, %9, %c0_i32_8 : i32
    scf.if %10 {
      %c0_9 = arith.constant 0 : index
      %c0_10 = arith.constant 0 : index
      %11 = vector.load %arg14[%c0_9, %c0_10] : memref<2x16xf32, #tpu.memory_space<vmem>>, vector<2x16xf32>
      %cst_11 = arith.constant 1.562500e-02 : f32
      %12 = vector.broadcast %cst_11 : f32 to vector<2x16xf32>
      %13 = arith.mulf %11, %12 : vector<2x16xf32>
      %c0_12 = arith.constant 0 : index
      %c0_13 = arith.constant 0 : index
      %14 = vector.load %arg3[%c0_12, %c0_13] : memref<16x4xf32, #tpu.memory_space<vmem>>, vector<16x4xf32>
      %cst_14 = arith.constant dense<0.000000e+00> : vector<2x4xf32>
      %15 = tpu.matmul %13, %14, %cst_14 {dimension_numbers = #tpu.dot_dimension_numbers<[1], [0], [0], [1], [0, 0, 1, 1], [], []>} : vector<2x16xf32>, vector<16x4xf32>, vector<2x4xf32> -> vector<2x4xf32>
      %c0_15 = arith.constant 0 : index
      %c0_16 = arith.constant 0 : index
      %16 = vector.load %arg4[%c0_15, %c0_16] : memref<1x4xf32, #tpu.memory_space<vmem>>, vector<1x4xf32>
      %17 = vector.broadcast %16 : vector<1x4xf32> to vector<2x4xf32>
      %18 = arith.addf %15, %17 : vector<2x4xf32>
      %cst_17 = arith.constant 0.000000e+00 : f32
      %19 = vector.broadcast %cst_17 : f32 to vector<2x4xf32>
      %20 = arith.maximumf %18, %19 : vector<2x4xf32>
      %c0_18 = arith.constant 0 : index
      %c0_19 = arith.constant 0 : index
      %21 = vector.load %arg5[%c0_18, %c0_19] : memref<4x16xf32, #tpu.memory_space<vmem>>, vector<4x16xf32>
      %cst_20 = arith.constant dense<0.000000e+00> : vector<2x16xf32>
      %22 = tpu.matmul %20, %21, %cst_20 {dimension_numbers = #tpu.dot_dimension_numbers<[1], [0], [0], [1], [0, 0, 1, 1], [], []>} : vector<2x4xf32>, vector<4x16xf32>, vector<2x16xf32> -> vector<2x16xf32>
      %c0_21 = arith.constant 0 : index
      %c0_22 = arith.constant 0 : index
      %23 = vector.load %arg6[%c0_21, %c0_22] : memref<1x16xf32, #tpu.memory_space<vmem>>, vector<1x16xf32>
      %24 = vector.broadcast %23 : vector<1x16xf32> to vector<2x16xf32>
      %25 = arith.addf %22, %24 : vector<2x16xf32>
      %26 = arith.negf %25 : vector<2x16xf32>
      %27 = math.exp %26 : vector<2x16xf32>
      %cst_23 = arith.constant 1.000000e+00 : f32
      %28 = vector.broadcast %cst_23 : f32 to vector<2x16xf32>
      %29 = arith.addf %28, %27 : vector<2x16xf32>
      %30 = arith.divf %28, %29 : vector<2x16xf32>
      %cst_24 = arith.constant 1.000000e+00 : f32
      %31 = vector.broadcast %cst_24 : f32 to vector<2x16xf32>
      %32 = arith.addf %31, %30 : vector<2x16xf32>
      %33 = arith.mulf %13, %32 : vector<2x16xf32>
      %c0_25 = arith.constant 0 : index
      %c0_26 = arith.constant 0 : index
      %34 = vector.load %arg7[%c0_25, %c0_26] : memref<16x24xf32, #tpu.memory_space<vmem>>, vector<16x24xf32>
      %cst_27 = arith.constant dense<0.000000e+00> : vector<2x24xf32>
      %35 = tpu.matmul %33, %34, %cst_27 {dimension_numbers = #tpu.dot_dimension_numbers<[1], [0], [0], [1], [0, 0, 1, 1], [], []>} : vector<2x16xf32>, vector<16x24xf32>, vector<2x24xf32> -> vector<2x24xf32>
      %c0_28 = arith.constant 0 : index
      %c0_29 = arith.constant 0 : index
      %36 = vector.load %arg8[%c0_28, %c0_29] : memref<1x24xf32, #tpu.memory_space<vmem>>, vector<1x24xf32>
      %37 = vector.broadcast %36 : vector<1x24xf32> to vector<2x24xf32>
      %38 = arith.addf %35, %37 : vector<2x24xf32>
      %cst_30 = arith.constant 0.000000e+00 : f32
      %39 = vector.broadcast %cst_30 : f32 to vector<2x24xf32>
      %40 = arith.maximumf %38, %39 : vector<2x24xf32>
      %cst_31 = arith.constant 0.000000e+00 : f32
      %41 = vector.broadcast %cst_31 : f32 to vector<2x128xf32>
      %c0_32 = arith.constant 0 : index
      %c0_33 = arith.constant 0 : index
      %42 = vector.load %arg9[%c0_32, %c0_33] : memref<24x4096xf32, #tpu.memory_space<vmem>>, vector<24x1024xf32>
      %cst_34 = arith.constant dense<0.000000e+00> : vector<2x1024xf32>
      %43 = tpu.matmul %40, %42, %cst_34 {dimension_numbers = #tpu.dot_dimension_numbers<[1], [0], [0], [1], [0, 0, 1, 1], [], []>} : vector<2x24xf32>, vector<24x1024xf32>, vector<2x1024xf32> -> vector<2x1024xf32>
      %c0_35 = arith.constant 0 : index
      %c0_36 = arith.constant 0 : index
      %44 = vector.load %arg10[%c0_35, %c0_36] : memref<1x4096xf32, #tpu.memory_space<vmem>>, vector<1x1024xf32>
      %45 = vector.broadcast %44 : vector<1x1024xf32> to vector<2x1024xf32>
      %46 = arith.addf %43, %45 : vector<2x1024xf32>
      %cst_37 = arith.constant 0.000000e+00 : f32
      %47 = vector.broadcast %cst_37 : f32 to vector<2x1024xf32>
      %48 = arith.maximumf %46, %47 : vector<2x1024xf32>
      %c0_38 = arith.constant 0 : index
      %c0_39 = arith.constant 0 : index
      %49 = vector.load %arg11[%c0_38, %c0_39] : memref<4096x128xf32, #tpu.memory_space<vmem>>, vector<1024x128xf32>
      %cst_40 = arith.constant dense<0.000000e+00> : vector<2x128xf32>
      %50 = tpu.matmul %48, %49, %cst_40 {dimension_numbers = #tpu.dot_dimension_numbers<[1], [0], [0], [1], [0, 0, 1, 1], [], []>} : vector<2x1024xf32>, vector<1024x128xf32>, vector<2x128xf32> -> vector<2x128xf32>
      %51 = arith.addf %41, %50 : vector<2x128xf32>
      %c0_41 = arith.constant 0 : index
      %c1024 = arith.constant 1024 : index
      %52 = vector.load %arg9[%c0_41, %c1024] : memref<24x4096xf32, #tpu.memory_space<vmem>>, vector<24x1024xf32>
      %cst_42 = arith.constant dense<0.000000e+00> : vector<2x1024xf32>
      %53 = tpu.matmul %40, %52, %cst_42 {dimension_numbers = #tpu.dot_dimension_numbers<[1], [0], [0], [1], [0, 0, 1, 1], [], []>} : vector<2x24xf32>, vector<24x1024xf32>, vector<2x1024xf32> -> vector<2x1024xf32>
      %c0_43 = arith.constant 0 : index
      %c1024_44 = arith.constant 1024 : index
      %54 = vector.load %arg10[%c0_43, %c1024_44] : memref<1x4096xf32, #tpu.memory_space<vmem>>, vector<1x1024xf32>
      %55 = vector.broadcast %54 : vector<1x1024xf32> to vector<2x1024xf32>
      %56 = arith.addf %53, %55 : vector<2x1024xf32>
      %cst_45 = arith.constant 0.000000e+00 : f32
      %57 = vector.broadcast %cst_45 : f32 to vector<2x1024xf32>
      %58 = arith.maximumf %56, %57 : vector<2x1024xf32>
      %c1024_46 = arith.constant 1024 : index
      %c0_47 = arith.constant 0 : index
      %59 = vector.load %arg11[%c1024_46, %c0_47] : memref<4096x128xf32, #tpu.memory_space<vmem>>, vector<1024x128xf32>
      %cst_48 = arith.constant dense<0.000000e+00> : vector<2x128xf32>
      %60 = tpu.matmul %58, %59, %cst_48 {dimension_numbers = #tpu.dot_dimension_numbers<[1], [0], [0], [1], [0, 0, 1, 1], [], []>} : vector<2x1024xf32>, vector<1024x128xf32>, vector<2x128xf32> -> vector<2x128xf32>
      %61 = arith.addf %51, %60 : vector<2x128xf32>
      %c0_49 = arith.constant 0 : index
      %c2048 = arith.constant 2048 : index
      %62 = vector.load %arg9[%c0_49, %c2048] : memref<24x4096xf32, #tpu.memory_space<vmem>>, vector<24x1024xf32>
      %cst_50 = arith.constant dense<0.000000e+00> : vector<2x1024xf32>
      %63 = tpu.matmul %40, %62, %cst_50 {dimension_numbers = #tpu.dot_dimension_numbers<[1], [0], [0], [1], [0, 0, 1, 1], [], []>} : vector<2x24xf32>, vector<24x1024xf32>, vector<2x1024xf32> -> vector<2x1024xf32>
      %c0_51 = arith.constant 0 : index
      %c2048_52 = arith.constant 2048 : index
      %64 = vector.load %arg10[%c0_51, %c2048_52] : memref<1x4096xf32, #tpu.memory_space<vmem>>, vector<1x1024xf32>
      %65 = vector.broadcast %64 : vector<1x1024xf32> to vector<2x1024xf32>
      %66 = arith.addf %63, %65 : vector<2x1024xf32>
      %cst_53 = arith.constant 0.000000e+00 : f32
      %67 = vector.broadcast %cst_53 : f32 to vector<2x1024xf32>
      %68 = arith.maximumf %66, %67 : vector<2x1024xf32>
      %c2048_54 = arith.constant 2048 : index
      %c0_55 = arith.constant 0 : index
      %69 = vector.load %arg11[%c2048_54, %c0_55] : memref<4096x128xf32, #tpu.memory_space<vmem>>, vector<1024x128xf32>
      %cst_56 = arith.constant dense<0.000000e+00> : vector<2x128xf32>
      %70 = tpu.matmul %68, %69, %cst_56 {dimension_numbers = #tpu.dot_dimension_numbers<[1], [0], [0], [1], [0, 0, 1, 1], [], []>} : vector<2x1024xf32>, vector<1024x128xf32>, vector<2x128xf32> -> vector<2x128xf32>
      %71 = arith.addf %61, %70 : vector<2x128xf32>
      %c0_57 = arith.constant 0 : index
      %c3072 = arith.constant 3072 : index
      %72 = vector.load %arg9[%c0_57, %c3072] : memref<24x4096xf32, #tpu.memory_space<vmem>>, vector<24x1024xf32>
      %cst_58 = arith.constant dense<0.000000e+00> : vector<2x1024xf32>
      %73 = tpu.matmul %40, %72, %cst_58 {dimension_numbers = #tpu.dot_dimension_numbers<[1], [0], [0], [1], [0, 0, 1, 1], [], []>} : vector<2x24xf32>, vector<24x1024xf32>, vector<2x1024xf32> -> vector<2x1024xf32>
      %c0_59 = arith.constant 0 : index
      %c3072_60 = arith.constant 3072 : index
      %74 = vector.load %arg10[%c0_59, %c3072_60] : memref<1x4096xf32, #tpu.memory_space<vmem>>, vector<1x1024xf32>
      %75 = vector.broadcast %74 : vector<1x1024xf32> to vector<2x1024xf32>
      %76 = arith.addf %73, %75 : vector<2x1024xf32>
      %cst_61 = arith.constant 0.000000e+00 : f32
      %77 = vector.broadcast %cst_61 : f32 to vector<2x1024xf32>
      %78 = arith.maximumf %76, %77 : vector<2x1024xf32>
      %c3072_62 = arith.constant 3072 : index
      %c0_63 = arith.constant 0 : index
      %79 = vector.load %arg11[%c3072_62, %c0_63] : memref<4096x128xf32, #tpu.memory_space<vmem>>, vector<1024x128xf32>
      %cst_64 = arith.constant dense<0.000000e+00> : vector<2x128xf32>
      %80 = tpu.matmul %78, %79, %cst_64 {dimension_numbers = #tpu.dot_dimension_numbers<[1], [0], [0], [1], [0, 0, 1, 1], [], []>} : vector<2x1024xf32>, vector<1024x128xf32>, vector<2x128xf32> -> vector<2x128xf32>
      %81 = arith.addf %71, %80 : vector<2x128xf32>
      %c0_65 = arith.constant 0 : index
      %c0_66 = arith.constant 0 : index
      %82 = vector.load %arg12[%c0_65, %c0_66] : memref<1x128xf32, #tpu.memory_space<vmem>>, vector<1x128xf32>
      %83 = vector.broadcast %82 : vector<1x128xf32> to vector<2x128xf32>
      %84 = arith.addf %81, %83 : vector<2x128xf32>
      %c0_67 = arith.constant 0 : index
      %c0_68 = arith.constant 0 : index
      %85 = vector.load %arg13[%c0_67, %c0_68] : memref<2x128xf32, #tpu.memory_space<vmem>>, vector<2x128xf32>
      tpu.vector_store %arg13[%c0_67, %c0_68], %84 {strides = array<i32>} : memref<2x128xf32, #tpu.memory_space<vmem>>, vector<2x128xf32>,
    } else {
    }
    return
  }
  func.func @transform_0(%arg0: i32, %arg1: i32) -> (i32, i32, i32) {
    %c0_i32 = arith.constant 0 : i32
    %c0_i32_0 = arith.constant 0 : i32
    return %arg0, %c0_i32, %arg1 : i32, i32, i32
  }
  func.func @transform_1(%arg0: i32, %arg1: i32) -> (i32, i32) {
    %c0_i32 = arith.constant 0 : i32
    %c0_i32_0 = arith.constant 0 : i32
    %c0_i32_1 = arith.constant 0 : i32
    return %c0_i32, %c0_i32_0 : i32, i32
  }
  func.func @transform_2(%arg0: i32, %arg1: i32) -> (i32, i32) {
    %c0_i32 = arith.constant 0 : i32
    %c0_i32_0 = arith.constant 0 : i32
    %c0_i32_1 = arith.constant 0 : i32
    return %c0_i32, %c0_i32_0 : i32, i32
  }
  func.func @transform_3(%arg0: i32, %arg1: i32) -> (i32, i32) {
    %c0_i32 = arith.constant 0 : i32
    %c0_i32_0 = arith.constant 0 : i32
    %c0_i32_1 = arith.constant 0 : i32
    return %c0_i32, %c0_i32_0 : i32, i32
  }
  func.func @transform_4(%arg0: i32, %arg1: i32) -> (i32, i32) {
    %c0_i32 = arith.constant 0 : i32
    %c0_i32_0 = arith.constant 0 : i32
    %c0_i32_1 = arith.constant 0 : i32
    return %c0_i32, %c0_i32_0 : i32, i32
  }
  func.func @transform_5(%arg0: i32, %arg1: i32) -> (i32, i32) {
    %c0_i32 = arith.constant 0 : i32
    %c0_i32_0 = arith.constant 0 : i32
    %c0_i32_1 = arith.constant 0 : i32
    return %c0_i32, %c0_i32_0 : i32, i32
  }
  func.func @transform_6(%arg0: i32, %arg1: i32) -> (i32, i32) {
    %c0_i32 = arith.constant 0 : i32
    %c0_i32_0 = arith.constant 0 : i32
    %c0_i32_1 = arith.constant 0 : i32
    return %c0_i32, %c0_i32_0 : i32, i32
  }
  func.func @transform_7(%arg0: i32, %arg1: i32) -> (i32, i32) {
    %c0_i32 = arith.constant 0 : i32
    %c0_i32_0 = arith.constant 0 : i32
    %c0_i32_1 = arith.constant 0 : i32
    return %c0_i32, %c0_i32_0 : i32, i32
  }
  func.func @transform_8(%arg0: i32, %arg1: i32) -> (i32, i32) {
    %c0_i32 = arith.constant 0 : i32
    %c0_i32_0 = arith.constant 0 : i32
    %c0_i32_1 = arith.constant 0 : i32
    return %c0_i32, %c0_i32_0 : i32, i32
  }
  func.func @transform_9(%arg0: i32, %arg1: i32) -> (i32, i32) {
    %c0_i32 = arith.constant 0 : i32
    %c0_i32_0 = arith.constant 0 : i32
    %c0_i32_1 = arith.constant 0 : i32
    return %c0_i32, %c0_i32_0 : i32, i32
  }
  func.func @transform_10(%arg0: i32, %arg1: i32) -> (i32, i32) {
    %c0_i32 = arith.constant 0 : i32
    %c0_i32_0 = arith.constant 0 : i32
    %c0_i32_1 = arith.constant 0 : i32
    return %c0_i32, %c0_i32_0 : i32, i32
  }
  func.func @transform_11(%arg0: i32, %arg1: i32) -> (i32, i32) {
    %c0_i32 = arith.constant 0 : i32
    %c0_i32_0 = arith.constant 0 : i32
    return %arg0, %c0_i32 : i32, i32
  }
}

</mosaic_0001>

<llo_original>
// kernel: tpu_custom_call.1
$region0: #{tpu_custom_call.1}
  #allocation0 [shape = 'u32[]', space=smem, size = 0x4, offset = 0x4, fixed_abs, tag = 'smem constant byte address 0x4 - core index']
  #allocation1 [shape = 'u32[72,128]{1,0:T(1,128)}', space=vmem, size = 0x9000, scoped, tag = 'internal scratch']
  #allocation2 [shape = 'f32[2,16]{1,0:T(2,128)}', space=vmem, size = 0x400, scoped, tag = 'scratch operand']
  %s0 = inlined_call_operand.hbm [shape: f32[2,16,64], index: 0, kind: input, shape index: {}]
  %s1 = inlined_call_operand.vmem [shape: f32[16,4], index: 1, kind: input, shape index: {}]
  %s2 = inlined_call_operand.hbm [shape: f32[1,4], index: 2, kind: input, shape index: {}]
  %s3 = inlined_call_operand.hbm [shape: f32[4,16], index: 3, kind: input, shape index: {}]
  %s4 = inlined_call_operand.hbm [shape: f32[1,16], index: 4, kind: input, shape index: {}]
  %s5 = inlined_call_operand.hbm [shape: f32[16,24], index: 5, kind: input, shape index: {}]
  %s6 = inlined_call_operand.hbm [shape: f32[1,24], index: 6, kind: input, shape index: {}]
  %s7 = inlined_call_operand.hbm [shape: f32[24,4096], index: 7, kind: input, shape index: {}]
  %s8 = inlined_call_operand.hbm [shape: f32[1,4096], index: 8, kind: input, shape index: {}]
  %s9 = inlined_call_operand.hbm [shape: f32[4096,128], index: 9, kind: input, shape index: {}]
  %s10 = inlined_call_operand.hbm [shape: f32[1,128], index: 10, kind: input, shape index: {}]
  %s11 = inlined_call_operand.hbm [shape: f32[2,128], index: 11, kind: output, shape index: {}]
  %s12 = sld [smem:[#allocation0]]
  $region102: #{tpu_custom_call.1} parent=0
    _
  %s14 = ssub.s32 1, %s12
  %s15 = scalar_select 0, %s14, %s12
  $region1: #{tpu_custom_call.1} parent=0
    #allocation3 [shape = 'u8[16384]{0}', space=vmem, size = 0x4000, scoped, tag = 'input window, operand 0, single buffered']
    #allocation4 [shape = 's32[1]{0}', space=sflag, size = 0x4, scoped, tag = 'scoped memory for tpu_custom_call.1']
    #allocation5 [shape = 's32[1]{0}', space=sflag, size = 0x4, scoped, tag = 'scoped memory for tpu_custom_call.1']
    #allocation6 [shape = 'u8[512]{0}', space=vmem, size = 0x400, scoped, tag = 'input window, operand 2, single buffered']
    #allocation7 [shape = 's32[1]{0}', space=sflag, size = 0x4, scoped, tag = 'scoped memory for tpu_custom_call.1']
    #allocation8 [shape = 'u8[2048]{0}', space=vmem, size = 0x800, scoped, tag = 'input window, operand 3, single buffered']
    #allocation9 [shape = 'u8[512]{0}', space=vmem, size = 0x400, scoped, tag = 'input window, operand 4, single buffered']
    #allocation10 [shape = 's32[1]{0}', space=sflag, size = 0x4, scoped, tag = 'scoped memory for tpu_custom_call.1']
    #allocation11 [shape = 'u8[8192]{0}', space=vmem, size = 0x2000, scoped, tag = 'input window, operand 5, single buffered']
    #allocation12 [shape = 'u8[512]{0}', space=vmem, size = 0x400, scoped, tag = 'input window, operand 6, single buffered']
    #allocation13 [shape = 's32[1]{0}', space=sflag, size = 0x4, scoped, tag = 'scoped memory for tpu_custom_call.1']
    #allocation14 [shape = 'u8[393216]{0}', space=vmem, size = 0x60000, scoped, tag = 'input window, operand 7, single buffered']
    #allocation15 [shape = 'u8[16384]{0}', space=vmem, size = 0x4000, scoped, tag = 'input window, operand 8, single buffered']
    #allocation16 [shape = 's32[1]{0}', space=sflag, size = 0x4, scoped, tag = 'scoped memory for tpu_custom_call.1']
    #allocation17 [shape = 'u8[2097152]{0}', space=vmem, size = 0x200000, scoped, tag = 'input window, operand 9, single buffered']
    #allocation18 [shape = 'u8[512]{0}', space=vmem, size = 0x400, scoped, tag = 'input window, operand 10, single buffered']
    #allocation19 [shape = 's32[1]{0}', space=sflag, size = 0x4, scoped, tag = 'scoped memory for tpu_custom_call.1']
    #allocation20 [shape = 'u8[1024]{0}', space=vmem, size = 0x400, scoped, tag = 'output window, operand 0, single buffered']
    %16 = vsyncpa [#allocation4], 0
    %17 = vsyncpa [#allocation7], 0
    %18 = vsyncpa [#allocation10], 0
    %19 = vsyncpa [#allocation13], 0
    %20 = vsyncpa [#allocation16], 0
    %21 = vsyncpa [#allocation19], 0
    %22 = vsyncpa [#allocation5], 0
    // Predicated region
    $region2: #{tpu_custom_call.1} parent=1 // pred_check
      _
    $region3: #{tpu_custom_call.1} parent=1 // pred_check_branch
      %24 = sbr.rel (0) target = $region5
    $region4: #{tpu_custom_call.1} parent=1 // pred_region
      %26 = vsyncadd [#allocation4], 0
      %s27 = sshll.u32 %s0, 4
      %s28 = int_to_ptr.hbm [resolvable:$true] %s27
      %s29 = sshll.u32 [#allocation3], 4
      %s30 = int_to_ptr.vmem [resolvable:$true] %s29
      %35 = dma.hbm_to_vmem [thread:$0]  %s28, 512, %s30, [#allocation4], 128, 128, 8
    $region5: #{tpu_custom_call.1} parent=1 // pred_fallthru
      _
    // Predicated region
    $region6: #{tpu_custom_call.1} parent=1 // pred_check
      _
    $region7: #{tpu_custom_call.1} parent=1 // pred_check_branch
      %37 = sbr.rel (0) target = $region9
    $region8: #{tpu_custom_call.1} parent=1 // pred_region
      _
    $region9: #{tpu_custom_call.1} parent=1 // pred_fallthru
      _
    // Predicated region
    $region10: #{tpu_custom_call.1} parent=1 // pred_check
      _
    $region11: #{tpu_custom_call.1} parent=1 // pred_check_branch
      %39 = sbr.rel (0) target = $region13
    $region12: #{tpu_custom_call.1} parent=1 // pred_region
      %41 = vsyncadd [#allocation7], 0
      %s43 = sshll.u32 %s2, 4
      %s44 = int_to_ptr.hbm [resolvable:$true] %s43
      %s45 = sshll.u32 [#allocation6], 4
      %s46 = int_to_ptr.vmem [resolvable:$true] %s45
      %48 = dma.hbm_to_vmem [thread:$0]  %s44, 16, %s46, [#allocation7]
    $region13: #{tpu_custom_call.1} parent=1 // pred_fallthru
      _
    // Predicated region
    $region14: #{tpu_custom_call.1} parent=1 // pred_check
      _
    $region15: #{tpu_custom_call.1} parent=1 // pred_check_branch
      %50 = sbr.rel (0) target = $region17
    $region16: #{tpu_custom_call.1} parent=1 // pred_region
      %52 = vsyncadd [#allocation7], 0
      %s54 = sshll.u32 %s3, 4
      %s55 = int_to_ptr.hbm [resolvable:$true] %s54
      %s56 = sshll.u32 [#allocation8], 4
      %s57 = int_to_ptr.vmem [resolvable:$true] %s56
      %59 = dma.hbm_to_vmem [thread:$0]  %s55, 64, %s57, [#allocation7]
    $region17: #{tpu_custom_call.1} parent=1 // pred_fallthru
      _
    // Predicated region
    $region18: #{tpu_custom_call.1} parent=1 // pred_check
      _
    $region19: #{tpu_custom_call.1} parent=1 // pred_check_branch
      %61 = sbr.rel (0) target = $region21
    $region20: #{tpu_custom_call.1} parent=1 // pred_region
      %63 = vsyncadd [#allocation10], 0
      %s65 = sshll.u32 %s4, 4
      %s66 = int_to_ptr.hbm [resolvable:$true] %s65
      %s67 = sshll.u32 [#allocation9], 4
      %s68 = int_to_ptr.vmem [resolvable:$true] %s67
      %70 = dma.hbm_to_vmem [thread:$0]  %s66, 16, %s68, [#allocation10]
    $region21: #{tpu_custom_call.1} parent=1 // pred_fallthru
      _
    // Predicated region
    $region22: #{tpu_custom_call.1} parent=1 // pred_check
      _
    $region23: #{tpu_custom_call.1} parent=1 // pred_check_branch
      %72 = sbr.rel (0) target = $region25
    $region24: #{tpu_custom_call.1} parent=1 // pred_region
      %74 = vsyncadd [#allocation10], 0
      %s75 = sshll.u32 %s5, 4
      %s76 = int_to_ptr.hbm [resolvable:$true] %s75
      %s77 = sshll.u32 [#allocation11], 4
      %s78 = int_to_ptr.vmem [resolvable:$true] %s77
      %83 = dma.hbm_to_vmem [thread:$0]  %s76, 256, %s78, [#allocation10], 128, 128, 8
    $region25: #{tpu_custom_call.1} parent=1 // pred_fallthru
      _
    // Predicated region
    $region26: #{tpu_custom_call.1} parent=1 // pred_check
      _
    $region27: #{tpu_custom_call.1} parent=1 // pred_check_branch
      %85 = sbr.rel (0) target = $region29
    $region28: #{tpu_custom_call.1} parent=1 // pred_region
      %87 = vsyncadd [#allocation13], 0
      %s89 = sshll.u32 %s6, 4
      %s90 = int_to_ptr.hbm [resolvable:$true] %s89
      %s91 = sshll.u32 [#allocation12], 4
      %s92 = int_to_ptr.vmem [resolvable:$true] %s91
      %94 = dma.hbm_to_vmem [thread:$0]  %s90, 16, %s92, [#allocation13]
    $region29: #{tpu_custom_call.1} parent=1 // pred_fallthru
      _
    // Predicated region
    $region30: #{tpu_custom_call.1} parent=1 // pred_check
      _
    $region31: #{tpu_custom_call.1} parent=1 // pred_check_branch
      %96 = sbr.rel (0) target = $region33
    $region32: #{tpu_custom_call.1} parent=1 // pred_region
      %98 = vsyncadd [#allocation13], 0
      %s99 = sshll.u32 %s7, 4
      %s100 = int_to_ptr.hbm [resolvable:$true] %s99
      %s101 = sshll.u32 [#allocation14], 4
      %s102 = int_to_ptr.vmem [resolvable:$true] %s101
      %107 = dma.hbm_to_vmem [thread:$0]  %s100, 12288, %s102, [#allocation13], 4096, 4096, 256
    $region33: #{tpu_custom_call.1} parent=1 // pred_fallthru
      _
    // Predicated region
    $region34: #{tpu_custom_call.1} parent=1 // pred_check
      _
    $region35: #{tpu_custom_call.1} parent=1 // pred_check_branch
      %109 = sbr.rel (0) target = $region37
    $region36: #{tpu_custom_call.1} parent=1 // pred_region
      %111 = vsyncadd [#allocation16], 0
      %s113 = sshll.u32 %s8, 4
      %s114 = int_to_ptr.hbm [resolvable:$true] %s113
      %s115 = sshll.u32 [#allocation15], 4
      %s116 = int_to_ptr.vmem [resolvable:$true] %s115
      %118 = dma.hbm_to_vmem [thread:$0]  %s114, 512, %s116, [#allocation16]
    $region37: #{tpu_custom_call.1} parent=1 // pred_fallthru
      _
    // Predicated region
    $region38: #{tpu_custom_call.1} parent=1 // pred_check
      _
    $region39: #{tpu_custom_call.1} parent=1 // pred_check_branch
      %120 = sbr.rel (0) target = $region41
    $region40: #{tpu_custom_call.1} parent=1 // pred_region
      %122 = vsyncadd [#allocation16], 0
      %s123 = sshll.u32 %s9, 4
      %s124 = int_to_ptr.hbm [resolvable:$true] %s123
      %s125 = sshll.u32 [#allocation17], 4
      %s126 = int_to_ptr.vmem [resolvable:$true] %s125
      %131 = dma.hbm_to_vmem [thread:$0]  %s124, 65536, %s126, [#allocation16], 128, 128, 8
    $region41: #{tpu_custom_call.1} parent=1 // pred_fallthru
      _
    // Predicated region
    $region42: #{tpu_custom_call.1} parent=1 // pred_check
      _
    $region43: #{tpu_custom_call.1} parent=1 // pred_check_branch
      %133 = sbr.rel (0) target = $region45
    $region44: #{tpu_custom_call.1} parent=1 // pred_region
      %135 = vsyncadd [#allocation19], 0
      %s137 = sshll.u32 %s10, 4
      %s138 = int_to_ptr.hbm [resolvable:$true] %s137
      %s139 = sshll.u32 [#allocation18], 4
      %s140 = int_to_ptr.vmem [resolvable:$true] %s139
      %142 = dma.hbm_to_vmem [thread:$0]  %s138, 16, %s140, [#allocation19]
    $region45: #{tpu_custom_call.1} parent=1 // pred_fallthru
      _
    // Predicated region
    $region46: #{tpu_custom_call.1} parent=1 // pred_check
      _
    $region47: #{tpu_custom_call.1} parent=1 // pred_check_branch
      %144 = sbr.rel (0) target = $region49
    $region48: #{tpu_custom_call.1} parent=1 // pred_region
      %146 = dma.done [#allocation4], 512
    $region49: #{tpu_custom_call.1} parent=1 // pred_fallthru
      _
    // Predicated region
    $region50: #{tpu_custom_call.1} parent=1 // pred_check
      _
    $region51: #{tpu_custom_call.1} parent=1 // pred_check_branch
      %148 = sbr.rel (0) target = $region53
    $region52: #{tpu_custom_call.1} parent=1 // pred_region
      %150 = dma.done [#allocation7], 16
    $region53: #{tpu_custom_call.1} parent=1 // pred_fallthru
      _
    // Predicated region
    $region54: #{tpu_custom_call.1} parent=1 // pred_check
      _
    $region55: #{tpu_custom_call.1} parent=1 // pred_check_branch
      %152 = sbr.rel (0) target = $region57
    $region56: #{tpu_custom_call.1} parent=1 // pred_region
      %154 = dma.done [#allocation7], 64
    $region57: #{tpu_custom_call.1} parent=1 // pred_fallthru
      _
    // Predicated region
    $region58: #{tpu_custom_call.1} parent=1 // pred_check
      _
    $region59: #{tpu_custom_call.1} parent=1 // pred_check_branch
      %156 = sbr.rel (0) target = $region61
    $region60: #{tpu_custom_call.1} parent=1 // pred_region
      %158 = dma.done [#allocation10], 16
    $region61: #{tpu_custom_call.1} parent=1 // pred_fallthru
      _
    // Predicated region
    $region62: #{tpu_custom_call.1} parent=1 // pred_check
      _
    $region63: #{tpu_custom_call.1} parent=1 // pred_check_branch
      %160 = sbr.rel (0) target = $region65
    $region64: #{tpu_custom_call.1} parent=1 // pred_region
      %162 = dma.done [#allocation10], 256
    $region65: #{tpu_custom_call.1} parent=1 // pred_fallthru
      _
    // Predicated region
    $region66: #{tpu_custom_call.1} parent=1 // pred_check
      _
    $region67: #{tpu_custom_call.1} parent=1 // pred_check_branch
      %164 = sbr.rel (0) target = $region69
    $region68: #{tpu_custom_call.1} parent=1 // pred_region
      %166 = dma.done [#allocation13], 16
    $region69: #{tpu_custom_call.1} parent=1 // pred_fallthru
      _
    // Predicated region
    $region70: #{tpu_custom_call.1} parent=1 // pred_check
      _
    $region71: #{tpu_custom_call.1} parent=1 // pred_check_branch
      %168 = sbr.rel (0) target = $region73
    $region72: #{tpu_custom_call.1} parent=1 // pred_region
      %170 = dma.done [#allocation13], 12288
    $region73: #{tpu_custom_call.1} parent=1 // pred_fallthru
      _
    // Predicated region
    $region74: #{tpu_custom_call.1} parent=1 // pred_check
      _
    $region75: #{tpu_custom_call.1} parent=1 // pred_check_branch
      %172 = sbr.rel (0) target = $region77
    $region76: #{tpu_custom_call.1} parent=1 // pred_region
      %174 = dma.done [#allocation16], 512
    $region77: #{tpu_custom_call.1} parent=1 // pred_fallthru
      _
    // Predicated region
    $region78: #{tpu_custom_call.1} parent=1 // pred_check
      _
    $region79: #{tpu_custom_call.1} parent=1 // pred_check_branch
      %176 = sbr.rel (0) target = $region81
    $region80: #{tpu_custom_call.1} parent=1 // pred_region
      %178 = dma.done [#allocation16], 65536
    $region81: #{tpu_custom_call.1} parent=1 // pred_fallthru
      _
    // Predicated region
    $region82: #{tpu_custom_call.1} parent=1 // pred_check
      _
    $region83: #{tpu_custom_call.1} parent=1 // pred_check_branch
      %180 = sbr.rel (0) target = $region85
    $region84: #{tpu_custom_call.1} parent=1 // pred_region
      %182 = dma.done [#allocation19], 16
    $region85: #{tpu_custom_call.1} parent=1 // pred_fallthru
      _
    %p183 = scmp.eq.s32.totalorder 0, 0
    // Predicated region
    $region86: #{tpu_custom_call.1} parent=1 // pred_check
      %p184 = pneg %p183
    $region87: #{tpu_custom_call.1} parent=1 // pred_check_branch
      %186 = sbr.rel (%p184) target = $region89
    $region88: #{tpu_custom_call.1} parent=1 // pred_region
      %vm187 = vcmask 123904
      %188 = vst.msk [vmem:[#allocation2] sm:$0x3] %vm187, 0.0
    $region89: #{tpu_custom_call.1} parent=1 // pred_fallthru
      _
    %v189 = vld [vmem:[#allocation3] sm:$0xff]
    %v190 = vld [vmem:[#allocation3 + $0x8] sm:$0xff]
    %v191 = vld [vmem:[#allocation3 + $0x10] sm:$0xff]
    %v192 = vld [vmem:[#allocation3 + $0x18] sm:$0xff]
    %v193 = vld [vmem:[#allocation2] sm:$0x3]
    %vm194 = vcmask 523264
    %v195 = vsel %vm194, %v189, 0.0
    %196 = vadd.xlane.f32.xlu0 %v195
    %v197 = vpop.xlane.xlu0 %196
    %v198 = vsel %vm194, %v190, 0.0
    %199 = vadd.xlane.f32.xlu0 %v198
    %v200 = vpop.xlane.xlu0 %199
    %v201 = vsel %vm194, %v191, 0.0
    %202 = vadd.xlane.f32.xlu0 %v201
    %v203 = vpop.xlane.xlu0 %202
    %v204 = vsel %vm194, %v192, 0.0
    %205 = vadd.xlane.f32.xlu0 %v204
    %v206 = vpop.xlane.xlu0 %205
    %v211 = vlaneseq
    %v212 = vand.u32 %v211, 127
    %v213 = vperm.slane %v197, %v212
    %v214 = vadd.s32 %v212, 4294967288
    %v215 = vperm.slane %v200, %v214
    %vm216 = vcmask 130112
    %v217 = vsel %vm216, %v215, %v213
    %v218 = vperm.slane %v203, %v212
    %v219 = vperm.slane %v206, %v214
    %v220 = vsel %vm216, %v219, %v218
    %vm221 = vcmask 1041409
    %v222 = vsel %vm221, %v220, %v217
    %v224 = vadd.f32 %v193, %v222
    %vm225 = vcmask 123904
    %226 = vst.msk [vmem:[#allocation2] sm:$0x3] %vm225, %v224
    // Predicated region
    $region90: #{tpu_custom_call.1} parent=1 // pred_check
      %p227 = pneg %p183
    $region91: #{tpu_custom_call.1} parent=1 // pred_check_branch
      %229 = sbr.rel (%p227) target = $region93
    $region92: #{tpu_custom_call.1} parent=1 // pred_region
      %v230 = vld [vmem:[#allocation2] sm:$0x3]
      %v231 = vmul.f32 %v230, 0.015625
      %v232 = vld [vmem:[%s1] sm:$0xff]
      %v233 = vld [vmem:[%s1 + $0x8] sm:$0xff]
      %v234 = vld [vmem:[#allocation6] sm:$0x1]
      %v236 = vperm.slane %v234, 0
      %vm238 = vcmask 130048
      %v240 = vsel %vm238, %v231, 0
      %242 = vmatpush.msra.mxu0 0.0
      %243 = vmatpush.msra.mxu0 0.0
      %244 = vmatpush.msra.mxu0 0.0
      %245 = vmatpush.msra.mxu0 0.0
      %246 = vmatpush.msra.mxu0 0.0
      %247 = vmatpush.msra.mxu0 0.0
      %248 = vmatpush.msra.mxu0 0.0
      %249 = vmatpush.msra.mxu0 0.0
      %250 = vmatpush.msra.mxu0 0.0
      %251 = vmatpush.msra.mxu0 0.0
      %252 = vmatpush.msra.mxu0 0.0
      %253 = vmatpush.msra.mxu0 0.0
      %254 = vmatpush.msra.mxu0 0.0
      %255 = vmatpush.msra.mxu0 0.0
      %256 = vmatpush.msra.mxu0 %v233
      %257 = vmatpush.msra.mxu0 %v232
      %258 = vmatmul.f32.gmra.mxu0 %v240
      %v259 = vpop.f32.mrf.mxu0
      %v260 = vadd.f32 %v236, %v259
      %261 = vdwg.mxu0
      %v262 = vmax.f32 %v260, 0.0
      %v263 = vld [vmem:[#allocation8] sm:$0xf]
      %v264 = vld [vmem:[#allocation9] sm:$0x1]
      %v266 = vperm.slane %v264, 0
      %vm268 = vcmask 31744
      %v270 = vsel %vm268, %v262, 0
      %vm272 = vcmask 1043456
      %v274 = vsel %vm272, %v263, 0
      %276 = vmatpush.msra.mxu0 0.0
      %277 = vmatpush.msra.mxu0 0.0
      %278 = vmatpush.msra.mxu0 0.0
      %279 = vmatpush.msra.mxu0 0.0
      %280 = vmatpush.msra.mxu0 0.0
      %281 = vmatpush.msra.mxu0 0.0
      %282 = vmatpush.msra.mxu0 0.0
      %283 = vmatpush.msra.mxu0 0.0
      %284 = vmatpush.msra.mxu0 0.0
      %285 = vmatpush.msra.mxu0 0.0
      %286 = vmatpush.msra.mxu0 0.0
      %287 = vmatpush.msra.mxu0 0.0
      %288 = vmatpush.msra.mxu0 0.0
      %289 = vmatpush.msra.mxu0 0.0
      %290 = vmatpush.msra.mxu0 0.0
      %291 = vmatpush.msra.mxu0 %v274
      %292 = vmatmul.f32.gmra.mxu0 %v270
      %v293 = vpop.f32.mrf.mxu0
      %v294 = vadd.f32 %v266, %v293
      %295 = vdwg.mxu0
      %v296 = vxor.u32 %v294, 2147483648
      %v297 = vmul.f32 %v296, 1.442695
      %v298 = vpow.pop %v297
      %v299 = vadd.f32 %v298, 1.0
      %v300 = vrcp.pop %v299
      %v301 = vmul.f32 %v299, %v300
      %v302 = vsub.f32 1.0, %v301
      %v303 = vmul.f32 %v300, %v302
      %v304 = vadd.f32 %v300, %v303
      %vm305 = vweird.f32 %v299
      %vm306 = vweird.f32 %v300
      %vm307 = vmor %vm305, %vm306
      %v308 = vsel %vm307, %v300, %v304
      %v309 = vand.u32 2147483647, %v299
      %vm310 = vcmp.eq.f32.partialorder %v309, 8.507059e+37
      %v311 = vand.u32 %v299, 2147483648
      %v312 = vor.u32 1.1754944e-38, %v311
      %v313 = vsel %vm310, %v312, %v308
      %v314 = vmul.f32 1.0, %v313
      %v315 = vadd.f32 %v314, 1.0
      %v316 = vmul.f32 %v231, %v315
      %v317 = vld [vmem:[#allocation11] sm:$0xff]
      %v318 = vld [vmem:[#allocation11 + $0x8] sm:$0xff]
      %v319 = vld [vmem:[#allocation12] sm:$0x1]
      %v321 = vperm.slane %v319, 0
      %v324 = vsel %vm238, %v316, 0
      %326 = vmatpush.msra.mxu0 0.0
      %327 = vmatpush.msra.mxu0 0.0
      %328 = vmatpush.msra.mxu0 0.0
      %329 = vmatpush.msra.mxu0 0.0
      %330 = vmatpush.msra.mxu0 0.0
      %331 = vmatpush.msra.mxu0 0.0
      %332 = vmatpush.msra.mxu0 0.0
      %333 = vmatpush.msra.mxu0 0.0
      %334 = vmatpush.msra.mxu0 0.0
      %335 = vmatpush.msra.mxu0 0.0
      %336 = vmatpush.msra.mxu0 0.0
      %337 = vmatpush.msra.mxu0 0.0
      %338 = vmatpush.msra.mxu0 0.0
      %339 = vmatpush.msra.mxu0 0.0
      %340 = vmatpush.msra.mxu0 %v318
      %341 = vmatpush.msra.mxu0 %v317
      %342 = vmatmul.f32.gmra.mxu0 %v324
      %v343 = vpop.f32.mrf.mxu0
      %v344 = vadd.f32 %v321, %v343
      %345 = vdwg.mxu0
      %v346 = vmax.f32 %v344, 0.0
      %v347 = vld [vmem:[#allocation14] sm:$0xff]
      %v348 = vld [vmem:[#allocation14 + $0x8] sm:$0xff]
      %v349 = vld [vmem:[#allocation14 + $0x10] sm:$0xff]
      %v350 = vld [vmem:[#allocation14 + $0x18] sm:$0xff]
      %v351 = vld [vmem:[#allocation14 + $0x20] sm:$0xff]
      %v352 = vld [vmem:[#allocation14 + $0x28] sm:$0xff]
      %v353 = vld [vmem:[#allocation14 + $0x30] sm:$0xff]
      %v354 = vld [vmem:[#allocation14 + $0x38] sm:$0xff]
      %v355 = vld [vmem:[#allocation14 + $0x100] sm:$0xff]
      %v356 = vld [vmem:[#allocation14 + $0x108] sm:$0xff]
      %v357 = vld [vmem:[#allocation14 + $0x110] sm:$0xff]
      %v358 = vld [vmem:[#allocation14 + $0x118] sm:$0xff]
      %v359 = vld [vmem:[#allocation14 + $0x120] sm:$0xff]
      %v360 = vld [vmem:[#allocation14 + $0x128] sm:$0xff]
      %v361 = vld [vmem:[#allocation14 + $0x130] sm:$0xff]
      %v362 = vld [vmem:[#allocation14 + $0x138] sm:$0xff]
      %v363 = vld [vmem:[#allocation14 + $0x200] sm:$0xff]
      %v364 = vld [vmem:[#allocation14 + $0x208] sm:$0xff]
      %v365 = vld [vmem:[#allocation14 + $0x210] sm:$0xff]
      %v366 = vld [vmem:[#allocation14 + $0x218] sm:$0xff]
      %v367 = vld [vmem:[#allocation14 + $0x220] sm:$0xff]
      %v368 = vld [vmem:[#allocation14 + $0x228] sm:$0xff]
      %v369 = vld [vmem:[#allocation14 + $0x230] sm:$0xff]
      %v370 = vld [vmem:[#allocation14 + $0x238] sm:$0xff]
      %v371 = vld [vmem:[#allocation15] sm:$0xff]
      %v373 = vperm.slane %v371, 0
      %v374 = vperm.slane %v371, 1
      %v375 = vperm.slane %v371, 2
      %v376 = vperm.slane %v371, 3
      %v377 = vperm.slane %v371, 4
      %v378 = vperm.slane %v371, 5
      %v379 = vperm.slane %v371, 6
      %v380 = vperm.slane %v371, 7
      %vm389 = vcmask 195584
      %v391 = vsel %vm389, %v346, 0
      %393 = vmatpush.msra.mxu0 0.0
      %394 = vmatpush.msra.mxu0 0.0
      %395 = vmatpush.msra.mxu0 0.0
      %396 = vmatpush.msra.mxu0 0.0
      %397 = vmatpush.msra.mxu0 0.0
      %398 = vmatpush.msra.mxu0 0.0
      %399 = vmatpush.msra.mxu0 0.0
      %400 = vmatpush.msra.mxu0 0.0
      %401 = vmatpush.msra.mxu0 0.0
      %402 = vmatpush.msra.mxu0 0.0
      %403 = vmatpush.msra.mxu0 0.0
      %404 = vmatpush.msra.mxu0 0.0
      %405 = vmatpush.msra.mxu0 0.0
      %406 = vmatpush.msra.mxu0 %v363
      %407 = vmatpush.msra.mxu0 %v355
      %408 = vmatpush.msra.mxu0 %v347
      %409 = vmatmul.f32.gmra.mxu0 %v391
      %v410 = vpop.f32.mrf.mxu0
      %v411 = vadd.f32 %v373, %v410
      %412 = vdwg.mxu0
      %413 = vmatpush.msra.mxu0 0.0
      %414 = vmatpush.msra.mxu0 0.0
      %415 = vmatpush.msra.mxu0 0.0
      %416 = vmatpush.msra.mxu0 0.0
      %417 = vmatpush.msra.mxu0 0.0
      %418 = vmatpush.msra.mxu0 0.0
      %419 = vmatpush.msra.mxu0 0.0
      %420 = vmatpush.msra.mxu0 0.0
      %421 = vmatpush.msra.mxu0 0.0
      %422 = vmatpush.msra.mxu0 0.0
      %423 = vmatpush.msra.mxu0 0.0
      %424 = vmatpush.msra.mxu0 0.0
      %425 = vmatpush.msra.mxu0 0.0
      %426 = vmatpush.msra.mxu0 %v364
      %427 = vmatpush.msra.mxu0 %v356
      %428 = vmatpush.msra.mxu0 %v348
      %429 = vmatmul.f32.gmra.mxu0 %v391
      %v430 = vpop.f32.mrf.mxu0
      %v431 = vadd.f32 %v374, %v430
      %432 = vdwg.mxu0
      %433 = vmatpush.msra.mxu0 0.0
      %434 = vmatpush.msra.mxu0 0.0
      %435 = vmatpush.msra.mxu0 0.0
      %436 = vmatpush.msra.mxu0 0.0
      %437 = vmatpush.msra.mxu0 0.0
      %438 = vmatpush.msra.mxu0 0.0
      %439 = vmatpush.msra.mxu0 0.0
      %440 = vmatpush.msra.mxu0 0.0
      %441 = vmatpush.msra.mxu0 0.0
      %442 = vmatpush.msra.mxu0 0.0
      %443 = vmatpush.msra.mxu0 0.0
      %444 = vmatpush.msra.mxu0 0.0
      %445 = vmatpush.msra.mxu0 0.0
      %446 = vmatpush.msra.mxu0 %v365
      %447 = vmatpush.msra.mxu0 %v357
      %448 = vmatpush.msra.mxu0 %v349
      %449 = vmatmul.f32.gmra.mxu0 %v391
      %v450 = vpop.f32.mrf.mxu0
      %v451 = vadd.f32 %v375, %v450
      %452 = vdwg.mxu0
      %453 = vmatpush.msra.mxu0 0.0
      %454 = vmatpush.msra.mxu0 0.0
      %455 = vmatpush.msra.mxu0 0.0
      %456 = vmatpush.msra.mxu0 0.0
      %457 = vmatpush.msra.mxu0 0.0
      %458 = vmatpush.msra.mxu0 0.0
      %459 = vmatpush.msra.mxu0 0.0
      %460 = vmatpush.msra.mxu0 0.0
      %461 = vmatpush.msra.mxu0 0.0
      %462 = vmatpush.msra.mxu0 0.0
      %463 = vmatpush.msra.mxu0 0.0
      %464 = vmatpush.msra.mxu0 0.0
      %465 = vmatpush.msra.mxu0 0.0
      %466 = vmatpush.msra.mxu0 %v366
      %467 = vmatpush.msra.mxu0 %v358
      %468 = vmatpush.msra.mxu0 %v350
      %469 = vmatmul.f32.gmra.mxu0 %v391
      %v470 = vpop.f32.mrf.mxu0
      %v471 = vadd.f32 %v376, %v470
      %472 = vdwg.mxu0
      %473 = vmatpush.msra.mxu0 0.0
      %474 = vmatpush.msra.mxu0 0.0
      %475 = vmatpush.msra.mxu0 0.0
      %476 = vmatpush.msra.mxu0 0.0
      %477 = vmatpush.msra.mxu0 0.0
      %478 = vmatpush.msra.mxu0 0.0
      %479 = vmatpush.msra.mxu0 0.0
      %480 = vmatpush.msra.mxu0 0.0
      %481 = vmatpush.msra.mxu0 0.0
      %482 = vmatpush.msra.mxu0 0.0
      %483 = vmatpush.msra.mxu0 0.0
      %484 = vmatpush.msra.mxu0 0.0
      %485 = vmatpush.msra.mxu0 0.0
      %486 = vmatpush.msra.mxu0 %v367
      %487 = vmatpush.msra.mxu0 %v359
      %488 = vmatpush.msra.mxu0 %v351
      %489 = vmatmul.f32.gmra.mxu0 %v391
      %v490 = vpop.f32.mrf.mxu0
      %v491 = vadd.f32 %v377, %v490
      %492 = vdwg.mxu0
      %493 = vmatpush.msra.mxu0 0.0
      %494 = vmatpush.msra.mxu0 0.0
      %495 = vmatpush.msra.mxu0 0.0
      %496 = vmatpush.msra.mxu0 0.0
      %497 = vmatpush.msra.mxu0 0.0
      %498 = vmatpush.msra.mxu0 0.0
      %499 = vmatpush.msra.mxu0 0.0
      %500 = vmatpush.msra.mxu0 0.0
      %501 = vmatpush.msra.mxu0 0.0
      %502 = vmatpush.msra.mxu0 0.0
      %503 = vmatpush.msra.mxu0 0.0
      %504 = vmatpush.msra.mxu0 0.0
      %505 = vmatpush.msra.mxu0 0.0
      %506 = vmatpush.msra.mxu0 %v368
      %507 = vmatpush.msra.mxu0 %v360
      %508 = vmatpush.msra.mxu0 %v352
      %509 = vmatmul.f32.gmra.mxu0 %v391
      %v510 = vpop.f32.mrf.mxu0
      %v511 = vadd.f32 %v378, %v510
      %512 = vdwg.mxu0
      %513 = vmatpush.msra.mxu0 0.0
      %514 = vmatpush.msra.mxu0 0.0
      %515 = vmatpush.msra.mxu0 0.0
      %516 = vmatpush.msra.mxu0 0.0
      %517 = vmatpush.msra.mxu0 0.0
      %518 = vmatpush.msra.mxu0 0.0
      %519 = vmatpush.msra.mxu0 0.0
      %520 = vmatpush.msra.mxu0 0.0
      %521 = vmatpush.msra.mxu0 0.0
      %522 = vmatpush.msra.mxu0 0.0
      %523 = vmatpush.msra.mxu0 0.0
      %524 = vmatpush.msra.mxu0 0.0
      %525 = vmatpush.msra.mxu0 0.0
      %526 = vmatpush.msra.mxu0 %v369
      %527 = vmatpush.msra.mxu0 %v361
      %528 = vmatpush.msra.mxu0 %v353
      %529 = vmatmul.f32.gmra.mxu0 %v391
      %v530 = vpop.f32.mrf.mxu0
      %v531 = vadd.f32 %v379, %v530
      %532 = vdwg.mxu0
      %533 = vmatpush.msra.mxu0 0.0
      %534 = vmatpush.msra.mxu0 0.0
      %535 = vmatpush.msra.mxu0 0.0
      %536 = vmatpush.msra.mxu0 0.0
      %537 = vmatpush.msra.mxu0 0.0
      %538 = vmatpush.msra.mxu0 0.0
      %539 = vmatpush.msra.mxu0 0.0
      %540 = vmatpush.msra.mxu0 0.0
      %541 = vmatpush.msra.mxu0 0.0
      %542 = vmatpush.msra.mxu0 0.0
      %543 = vmatpush.msra.mxu0 0.0
      %544 = vmatpush.msra.mxu0 0.0
      %545 = vmatpush.msra.mxu0 0.0
      %546 = vmatpush.msra.mxu0 %v370
      %547 = vmatpush.msra.mxu0 %v362
      %548 = vmatpush.msra.mxu0 %v354
      %549 = vmatmul.f32.gmra.mxu0 %v391
      %v550 = vpop.f32.mrf.mxu0
      %v551 = vadd.f32 %v380, %v550
      %552 = vdwg.mxu0
      %v553 = vmax.f32 %v411, 0.0
      %v554 = vmax.f32 %v431, 0.0
      %v555 = vmax.f32 %v451, 0.0
      %v556 = vmax.f32 %v471, 0.0
      %v557 = vmax.f32 %v491, 0.0
      %v558 = vmax.f32 %v511, 0.0
      %v559 = vmax.f32 %v531, 0.0
      %v560 = vmax.f32 %v551, 0.0
      %v561 = vld [vmem:[#allocation17] sm:$0xff]
      %v562 = vld [vmem:[#allocation17 + $0x8] sm:$0xff]
      %v563 = vld [vmem:[#allocation17 + $0x10] sm:$0xff]
      %v564 = vld [vmem:[#allocation17 + $0x18] sm:$0xff]
      %v565 = vld [vmem:[#allocation17 + $0x20] sm:$0xff]
      %v566 = vld [vmem:[#allocation17 + $0x28] sm:$0xff]
      %v567 = vld [vmem:[#allocation17 + $0x30] sm:$0xff]
      %v568 = vld [vmem:[#allocation17 + $0x38] sm:$0xff]
      %v569 = vld [vmem:[#allocation17 + $0x40] sm:$0xff]
      %v570 = vld [vmem:[#allocation17 + $0x48] sm:$0xff]
      %v571 = vld [vmem:[#allocation17 + $0x50] sm:$0xff]
      %v572 = vld [vmem:[#allocation17 + $0x58] sm:$0xff]
      %v573 = vld [vmem:[#allocation17 + $0x60] sm:$0xff]
      %v574 = vld [vmem:[#allocation17 + $0x68] sm:$0xff]
      %v575 = vld [vmem:[#allocation17 + $0x70] sm:$0xff]
      %v576 = vld [vmem:[#allocation17 + $0x78] sm:$0xff]
      %v577 = vld [vmem:[#allocation17 + $0x80] sm:$0xff]
      %v578 = vld [vmem:[#allocation17 + $0x88] sm:$0xff]
      %v579 = vld [vmem:[#allocation17 + $0x90] sm:$0xff]
      %v580 = vld [vmem:[#allocation17 + $0x98] sm:$0xff]
      %v581 = vld [vmem:[#allocation17 + $0xa0] sm:$0xff]
      %v582 = vld [vmem:[#allocation17 + $0xa8] sm:$0xff]
      %v583 = vld [vmem:[#allocation17 + $0xb0] sm:$0xff]
      %v584 = vld [vmem:[#allocation17 + $0xb8] sm:$0xff]
      %v585 = vld [vmem:[#allocation17 + $0xc0] sm:$0xff]
      %v586 = vld [vmem:[#allocation17 + $0xc8] sm:$0xff]
      %v587 = vld [vmem:[#allocation17 + $0xd0] sm:$0xff]
      %v588 = vld [vmem:[#allocation17 + $0xd8] sm:$0xff]
      %v589 = vld [vmem:[#allocation17 + $0xe0] sm:$0xff]
      %v590 = vld [vmem:[#allocation17 + $0xe8] sm:$0xff]
      %v591 = vld [vmem:[#allocation17 + $0xf0] sm:$0xff]
      %v592 = vld [vmem:[#allocation17 + $0xf8] sm:$0xff]
      %v593 = vld [vmem:[#allocation17 + $0x100] sm:$0xff]
      %v594 = vld [vmem:[#allocation17 + $0x108] sm:$0xff]
      %v595 = vld [vmem:[#allocation17 + $0x110] sm:$0xff]
      %v596 = vld [vmem:[#allocation17 + $0x118] sm:$0xff]
      %v597 = vld [vmem:[#allocation17 + $0x120] sm:$0xff]
      %v598 = vld [vmem:[#allocation17 + $0x128] sm:$0xff]
      %v599 = vld [vmem:[#allocation17 + $0x130] sm:$0xff]
      %v600 = vld [vmem:[#allocation17 + $0x138] sm:$0xff]
      %v601 = vld [vmem:[#allocation17 + $0x140] sm:$0xff]
      %v602 = vld [vmem:[#allocation17 + $0x148] sm:$0xff]
      %v603 = vld [vmem:[#allocation17 + $0x150] sm:$0xff]
      %v604 = vld [vmem:[#allocation17 + $0x158] sm:$0xff]
      %v605 = vld [vmem:[#allocation17 + $0x160] sm:$0xff]
      %v606 = vld [vmem:[#allocation17 + $0x168] sm:$0xff]
      %v607 = vld [vmem:[#allocation17 + $0x170] sm:$0xff]
      %v608 = vld [vmem:[#allocation17 + $0x178] sm:$0xff]
      %v609 = vld [vmem:[#allocation17 + $0x180] sm:$0xff]
      %v610 = vld [vmem:[#allocation17 + $0x188] sm:$0xff]
      %v611 = vld [vmem:[#allocation17 + $0x190] sm:$0xff]
      %v612 = vld [vmem:[#allocation17 + $0x198] sm:$0xff]
      %v613 = vld [vmem:[#allocation17 + $0x1a0] sm:$0xff]
      %v614 = vld [vmem:[#allocation17 + $0x1a8] sm:$0xff]
      %v615 = vld [vmem:[#allocation17 + $0x1b0] sm:$0xff]
      %v616 = vld [vmem:[#allocation17 + $0x1b8] sm:$0xff]
      %v617 = vld [vmem:[#allocation17 + $0x1c0] sm:$0xff]
      %v618 = vld [vmem:[#allocation17 + $0x1c8] sm:$0xff]
      %v619 = vld [vmem:[#allocation17 + $0x1d0] sm:$0xff]
      %v620 = vld [vmem:[#allocation17 + $0x1d8] sm:$0xff]
      %v621 = vld [vmem:[#allocation17 + $0x1e0] sm:$0xff]
      %v622 = vld [vmem:[#allocation17 + $0x1e8] sm:$0xff]
      %v623 = vld [vmem:[#allocation17 + $0x1f0] sm:$0xff]
      %v624 = vld [vmem:[#allocation17 + $0x1f8] sm:$0xff]
      %v625 = vld [vmem:[#allocation17 + $0x200] sm:$0xff]
      %v626 = vld [vmem:[#allocation17 + $0x208] sm:$0xff]
      %v627 = vld [vmem:[#allocation17 + $0x210] sm:$0xff]
      %v628 = vld [vmem:[#allocation17 + $0x218] sm:$0xff]
      %v629 = vld [vmem:[#allocation17 + $0x220] sm:$0xff]
      %v630 = vld [vmem:[#allocation17 + $0x228] sm:$0xff]
      %v631 = vld [vmem:[#allocation17 + $0x230] sm:$0xff]
      %v632 = vld [vmem:[#allocation17 + $0x238] sm:$0xff]
      %v633 = vld [vmem:[#allocation17 + $0x240] sm:$0xff]
      %v634 = vld [vmem:[#allocation17 + $0x248] sm:$0xff]
      %v635 = vld [vmem:[#allocation17 + $0x250] sm:$0xff]
      %v636 = vld [vmem:[#allocation17 + $0x258] sm:$0xff]
      %v637 = vld [vmem:[#allocation17 + $0x260] sm:$0xff]
      %v638 = vld [vmem:[#allocation17 + $0x268] sm:$0xff]
      %v639 = vld [vmem:[#allocation17 + $0x270] sm:$0xff]
      %v640 = vld [vmem:[#allocation17 + $0x278] sm:$0xff]
      %v641 = vld [vmem:[#allocation17 + $0x280] sm:$0xff]
      %v642 = vld [vmem:[#allocation17 + $0x288] sm:$0xff]
      %v643 = vld [vmem:[#allocation17 + $0x290] sm:$0xff]
      %v644 = vld [vmem:[#allocation17 + $0x298] sm:$0xff]
      %v645 = vld [vmem:[#allocation17 + $0x2a0] sm:$0xff]
      %v646 = vld [vmem:[#allocation17 + $0x2a8] sm:$0xff]
      %v647 = vld [vmem:[#allocation17 + $0x2b0] sm:$0xff]
      %v648 = vld [vmem:[#allocation17 + $0x2b8] sm:$0xff]
      %v649 = vld [vmem:[#allocation17 + $0x2c0] sm:$0xff]
      %v650 = vld [vmem:[#allocation17 + $0x2c8] sm:$0xff]
      %v651 = vld [vmem:[#allocation17 + $0x2d0] sm:$0xff]
      %v652 = vld [vmem:[#allocation17 + $0x2d8] sm:$0xff]
      %v653 = vld [vmem:[#allocation17 + $0x2e0] sm:$0xff]
      %v654 = vld [vmem:[#allocation17 + $0x2e8] sm:$0xff]
      %v655 = vld [vmem:[#allocation17 + $0x2f0] sm:$0xff]
      %v656 = vld [vmem:[#allocation17 + $0x2f8] sm:$0xff]
      %v657 = vld [vmem:[#allocation17 + $0x300] sm:$0xff]
      %v658 = vld [vmem:[#allocation17 + $0x308] sm:$0xff]
      %v659 = vld [vmem:[#allocation17 + $0x310] sm:$0xff]
      %v660 = vld [vmem:[#allocation17 + $0x318] sm:$0xff]
      %v661 = vld [vmem:[#allocation17 + $0x320] sm:$0xff]
      %v662 = vld [vmem:[#allocation17 + $0x328] sm:$0xff]
      %v663 = vld [vmem:[#allocation17 + $0x330] sm:$0xff]
      %v664 = vld [vmem:[#allocation17 + $0x338] sm:$0xff]
      %v665 = vld [vmem:[#allocation17 + $0x340] sm:$0xff]
      %v666 = vld [vmem:[#allocation17 + $0x348] sm:$0xff]
      %v667 = vld [vmem:[#allocation17 + $0x350] sm:$0xff]
      %v668 = vld [vmem:[#allocation17 + $0x358] sm:$0xff]
      %v669 = vld [vmem:[#allocation17 + $0x360] sm:$0xff]
      %v670 = vld [vmem:[#allocation17 + $0x368] sm:$0xff]
      %v671 = vld [vmem:[#allocation17 + $0x370] sm:$0xff]
      %v672 = vld [vmem:[#allocation17 + $0x378] sm:$0xff]
      %v673 = vld [vmem:[#allocation17 + $0x380] sm:$0xff]
      %v674 = vld [vmem:[#allocation17 + $0x388] sm:$0xff]
      %v675 = vld [vmem:[#allocation17 + $0x390] sm:$0xff]
      %v676 = vld [vmem:[#allocation17 + $0x398] sm:$0xff]
      %v677 = vld [vmem:[#allocation17 + $0x3a0] sm:$0xff]
      %v678 = vld [vmem:[#allocation17 + $0x3a8] sm:$0xff]
      %v679 = vld [vmem:[#allocation17 + $0x3b0] sm:$0xff]
      %v680 = vld [vmem:[#allocation17 + $0x3b8] sm:$0xff]
      %v681 = vld [vmem:[#allocation17 + $0x3c0] sm:$0xff]
      %v682 = vld [vmem:[#allocation17 + $0x3c8] sm:$0xff]
      %v683 = vld [vmem:[#allocation17 + $0x3d0] sm:$0xff]
      %v684 = vld [vmem:[#allocation17 + $0x3d8] sm:$0xff]
      %v685 = vld [vmem:[#allocation17 + $0x3e0] sm:$0xff]
      %v686 = vld [vmem:[#allocation17 + $0x3e8] sm:$0xff]
      %v687 = vld [vmem:[#allocation17 + $0x3f0] sm:$0xff]
      %v688 = vld [vmem:[#allocation17 + $0x3f8] sm:$0xff]
      %v689 = vld [vmem:[#allocation14 + $0x40] sm:$0xff]
      %v690 = vld [vmem:[#allocation14 + $0x48] sm:$0xff]
      %v691 = vld [vmem:[#allocation14 + $0x50] sm:$0xff]
      %v692 = vld [vmem:[#allocation14 + $0x58] sm:$0xff]
      %v693 = vld [vmem:[#allocation14 + $0x60] sm:$0xff]
      %v694 = vld [vmem:[#allocation14 + $0x68] sm:$0xff]
      %v695 = vld [vmem:[#allocation14 + $0x70] sm:$0xff]
      %v696 = vld [vmem:[#allocation14 + $0x78] sm:$0xff]
      %v697 = vld [vmem:[#allocation14 + $0x140] sm:$0xff]
      %v698 = vld [vmem:[#allocation14 + $0x148] sm:$0xff]
      %v699 = vld [vmem:[#allocation14 + $0x150] sm:$0xff]
      %v700 = vld [vmem:[#allocation14 + $0x158] sm:$0xff]
      %v701 = vld [vmem:[#allocation14 + $0x160] sm:$0xff]
      %v702 = vld [vmem:[#allocation14 + $0x168] sm:$0xff]
      %v703 = vld [vmem:[#allocation14 + $0x170] sm:$0xff]
      %v704 = vld [vmem:[#allocation14 + $0x178] sm:$0xff]
      %v705 = vld [vmem:[#allocation14 + $0x240] sm:$0xff]
      %v706 = vld [vmem:[#allocation14 + $0x248] sm:$0xff]
      %v707 = vld [vmem:[#allocation14 + $0x250] sm:$0xff]
      %v708 = vld [vmem:[#allocation14 + $0x258] sm:$0xff]
      %v709 = vld [vmem:[#allocation14 + $0x260] sm:$0xff]
      %v710 = vld [vmem:[#allocation14 + $0x268] sm:$0xff]
      %v711 = vld [vmem:[#allocation14 + $0x270] sm:$0xff]
      %v712 = vld [vmem:[#allocation14 + $0x278] sm:$0xff]
      %v713 = vld [vmem:[#allocation15 + $0x8] sm:$0xff]
      %v715 = vperm.slane %v713, 0
      %v716 = vperm.slane %v713, 1
      %v717 = vperm.slane %v713, 2
      %v718 = vperm.slane %v713, 3
      %v719 = vperm.slane %v713, 4
      %v720 = vperm.slane %v713, 5
      %v721 = vperm.slane %v713, 6
      %v722 = vperm.slane %v713, 7
      %731 = vmatpush.msra.mxu0 0.0
      %732 = vmatpush.msra.mxu0 0.0
      %733 = vmatpush.msra.mxu0 0.0
      %734 = vmatpush.msra.mxu0 0.0
      %735 = vmatpush.msra.mxu0 0.0
      %736 = vmatpush.msra.mxu0 0.0
      %737 = vmatpush.msra.mxu0 0.0
      %738 = vmatpush.msra.mxu0 0.0
      %739 = vmatpush.msra.mxu0 0.0
      %740 = vmatpush.msra.mxu0 0.0
      %741 = vmatpush.msra.mxu0 0.0
      %742 = vmatpush.msra.mxu0 0.0
      %743 = vmatpush.msra.mxu0 0.0
      %744 = vmatpush.msra.mxu0 %v705
      %745 = vmatpush.msra.mxu0 %v697
      %746 = vmatpush.msra.mxu0 %v689
      %747 = vmatmul.f32.gmra.mxu0 %v391
      %v748 = vpop.f32.mrf.mxu0
      %v749 = vadd.f32 %v715, %v748
      %750 = vdwg.mxu0
      %751 = vmatpush.msra.mxu0 0.0
      %752 = vmatpush.msra.mxu0 0.0
      %753 = vmatpush.msra.mxu0 0.0
      %754 = vmatpush.msra.mxu0 0.0
      %755 = vmatpush.msra.mxu0 0.0
      %756 = vmatpush.msra.mxu0 0.0
      %757 = vmatpush.msra.mxu0 0.0
      %758 = vmatpush.msra.mxu0 0.0
      %759 = vmatpush.msra.mxu0 0.0
      %760 = vmatpush.msra.mxu0 0.0
      %761 = vmatpush.msra.mxu0 0.0
      %762 = vmatpush.msra.mxu0 0.0
      %763 = vmatpush.msra.mxu0 0.0
      %764 = vmatpush.msra.mxu0 %v706
      %765 = vmatpush.msra.mxu0 %v698
      %766 = vmatpush.msra.mxu0 %v690
      %767 = vmatmul.f32.gmra.mxu0 %v391
      %v768 = vpop.f32.mrf.mxu0
      %v769 = vadd.f32 %v716, %v768
      %770 = vdwg.mxu0
      %771 = vmatpush.msra.mxu0 0.0
      %772 = vmatpush.msra.mxu0 0.0
      %773 = vmatpush.msra.mxu0 0.0
      %774 = vmatpush.msra.mxu0 0.0
      %775 = vmatpush.msra.mxu0 0.0
      %776 = vmatpush.msra.mxu0 0.0
      %777 = vmatpush.msra.mxu0 0.0
      %778 = vmatpush.msra.mxu0 0.0
      %779 = vmatpush.msra.mxu0 0.0
      %780 = vmatpush.msra.mxu0 0.0
      %781 = vmatpush.msra.mxu0 0.0
      %782 = vmatpush.msra.mxu0 0.0
      %783 = vmatpush.msra.mxu0 0.0
      %784 = vmatpush.msra.mxu0 %v707
      %785 = vmatpush.msra.mxu0 %v699
      %786 = vmatpush.msra.mxu0 %v691
      %787 = vmatmul.f32.gmra.mxu0 %v391
      %v788 = vpop.f32.mrf.mxu0
      %v789 = vadd.f32 %v717, %v788
      %790 = vdwg.mxu0
      %791 = vmatpush.msra.mxu0 0.0
      %792 = vmatpush.msra.mxu0 0.0
      %793 = vmatpush.msra.mxu0 0.0
      %794 = vmatpush.msra.mxu0 0.0
      %795 = vmatpush.msra.mxu0 0.0
      %796 = vmatpush.msra.mxu0 0.0
      %797 = vmatpush.msra.mxu0 0.0
      %798 = vmatpush.msra.mxu0 0.0
      %799 = vmatpush.msra.mxu0 0.0
      %800 = vmatpush.msra.mxu0 0.0
      %801 = vmatpush.msra.mxu0 0.0
      %802 = vmatpush.msra.mxu0 0.0
      %803 = vmatpush.msra.mxu0 0.0
      %804 = vmatpush.msra.mxu0 %v708
      %805 = vmatpush.msra.mxu0 %v700
      %806 = vmatpush.msra.mxu0 %v692
      %807 = vmatmul.f32.gmra.mxu0 %v391
      %v808 = vpop.f32.mrf.mxu0
      %v809 = vadd.f32 %v718, %v808
      %810 = vdwg.mxu0
      %811 = vmatpush.msra.mxu0 0.0
      %812 = vmatpush.msra.mxu0 0.0
      %813 = vmatpush.msra.mxu0 0.0
      %814 = vmatpush.msra.mxu0 0.0
      %815 = vmatpush.msra.mxu0 0.0
      %816 = vmatpush.msra.mxu0 0.0
      %817 = vmatpush.msra.mxu0 0.0
      %818 = vmatpush.msra.mxu0 0.0
      %819 = vmatpush.msra.mxu0 0.0
      %820 = vmatpush.msra.mxu0 0.0
      %821 = vmatpush.msra.mxu0 0.0
      %822 = vmatpush.msra.mxu0 0.0
      %823 = vmatpush.msra.mxu0 0.0
      %824 = vmatpush.msra.mxu0 %v709
      %825 = vmatpush.msra.mxu0 %v701
      %826 = vmatpush.msra.mxu0 %v693
      %827 = vmatmul.f32.gmra.mxu0 %v391
      %v828 = vpop.f32.mrf.mxu0
      %v829 = vadd.f32 %v719, %v828
      %830 = vdwg.mxu0
      %831 = vmatpush.msra.mxu0 0.0
      %832 = vmatpush.msra.mxu0 0.0
      %833 = vmatpush.msra.mxu0 0.0
      %834 = vmatpush.msra.mxu0 0.0
      %835 = vmatpush.msra.mxu0 0.0
      %836 = vmatpush.msra.mxu0 0.0
      %837 = vmatpush.msra.mxu0 0.0
      %838 = vmatpush.msra.mxu0 0.0
      %839 = vmatpush.msra.mxu0 0.0
      %840 = vmatpush.msra.mxu0 0.0
      %841 = vmatpush.msra.mxu0 0.0
      %842 = vmatpush.msra.mxu0 0.0
      %843 = vmatpush.msra.mxu0 0.0
      %844 = vmatpush.msra.mxu0 %v710
      %845 = vmatpush.msra.mxu0 %v702
      %846 = vmatpush.msra.mxu0 %v694
      %847 = vmatmul.f32.gmra.mxu0 %v391
      %v848 = vpop.f32.mrf.mxu0
      %v849 = vadd.f32 %v720, %v848
      %850 = vdwg.mxu0
      %851 = vmatpush.msra.mxu0 0.0
      %852 = vmatpush.msra.mxu0 0.0
      %853 = vmatpush.msra.mxu0 0.0
      %854 = vmatpush.msra.mxu0 0.0
      %855 = vmatpush.msra.mxu0 0.0
      %856 = vmatpush.msra.mxu0 0.0
      %857 = vmatpush.msra.mxu0 0.0
      %858 = vmatpush.msra.mxu0 0.0
      %859 = vmatpush.msra.mxu0 0.0
      %860 = vmatpush.msra.mxu0 0.0
      %861 = vmatpush.msra.mxu0 0.0
      %862 = vmatpush.msra.mxu0 0.0
      %863 = vmatpush.msra.mxu0 0.0
      %864 = vmatpush.msra.mxu0 %v711
      %865 = vmatpush.msra.mxu0 %v703
      %866 = vmatpush.msra.mxu0 %v695
      %867 = vmatmul.f32.gmra.mxu0 %v391
      %v868 = vpop.f32.mrf.mxu0
      %v869 = vadd.f32 %v721, %v868
      %870 = vdwg.mxu0
      %871 = vmatpush.msra.mxu0 0.0
      %872 = vmatpush.msra.mxu0 0.0
      %873 = vmatpush.msra.mxu0 0.0
      %874 = vmatpush.msra.mxu0 0.0
      %875 = vmatpush.msra.mxu0 0.0
      %876 = vmatpush.msra.mxu0 0.0
      %877 = vmatpush.msra.mxu0 0.0
      %878 = vmatpush.msra.mxu0 0.0
      %879 = vmatpush.msra.mxu0 0.0
      %880 = vmatpush.msra.mxu0 0.0
      %881 = vmatpush.msra.mxu0 0.0
      %882 = vmatpush.msra.mxu0 0.0
      %883 = vmatpush.msra.mxu0 0.0
      %884 = vmatpush.msra.mxu0 %v712
      %885 = vmatpush.msra.mxu0 %v704
      %886 = vmatpush.msra.mxu0 %v696
      %887 = vmatmul.f32.gmra.mxu0 %v391
      %v888 = vpop.f32.mrf.mxu0
      %v889 = vadd.f32 %v722, %v888
      %890 = vdwg.mxu0
      %v891 = vmax.f32 %v749, 0.0
      %v892 = vmax.f32 %v769, 0.0
      %v893 = vmax.f32 %v789, 0.0
      %v894 = vmax.f32 %v809, 0.0
      %v895 = vmax.f32 %v829, 0.0
      %v896 = vmax.f32 %v849, 0.0
      %v897 = vmax.f32 %v869, 0.0
      %v898 = vmax.f32 %v889, 0.0
      %v899 = vld [vmem:[#allocation17 + $0x400] sm:$0xff]
      %v900 = vld [vmem:[#allocation17 + $0x408] sm:$0xff]
      %v901 = vld [vmem:[#allocation17 + $0x410] sm:$0xff]
      %v902 = vld [vmem:[#allocation17 + $0x418] sm:$0xff]
      %v903 = vld [vmem:[#allocation17 + $0x420] sm:$0xff]
      %v904 = vld [vmem:[#allocation17 + $0x428] sm:$0xff]
      %v905 = vld [vmem:[#allocation17 + $0x430] sm:$0xff]
      %v906 = vld [vmem:[#allocation17 + $0x438] sm:$0xff]
      %v907 = vld [vmem:[#allocation17 + $0x440] sm:$0xff]
      %v908 = vld [vmem:[#allocation17 + $0x448] sm:$0xff]
      %v909 = vld [vmem:[#allocation17 + $0x450] sm:$0xff]
      %v910 = vld [vmem:[#allocation17 + $0x458] sm:$0xff]
      %v911 = vld [vmem:[#allocation17 + $0x460] sm:$0xff]
      %v912 = vld [vmem:[#allocation17 + $0x468] sm:$0xff]
      %v913 = vld [vmem:[#allocation17 + $0x470] sm:$0xff]
      %v914 = vld [vmem:[#allocation17 + $0x478] sm:$0xff]
      %v915 = vld [vmem:[#allocation17 + $0x480] sm:$0xff]
      %v916 = vld [vmem:[#allocation17 + $0x488] sm:$0xff]
      %v917 = vld [vmem:[#allocation17 + $0x490] sm:$0xff]
      %v918 = vld [vmem:[#allocation17 + $0x498] sm:$0xff]
      %v919 = vld [vmem:[#allocation17 + $0x4a0] sm:$0xff]
      %v920 = vld [vmem:[#allocation17 + $0x4a8] sm:$0xff]
      %v921 = vld [vmem:[#allocation17 + $0x4b0] sm:$0xff]
      %v922 = vld [vmem:[#allocation17 + $0x4b8] sm:$0xff]
      %v923 = vld [vmem:[#allocation17 + $0x4c0] sm:$0xff]
      %v924 = vld [vmem:[#allocation17 + $0x4c8] sm:$0xff]
      %v925 = vld [vmem:[#allocation17 + $0x4d0] sm:$0xff]
      %v926 = vld [vmem:[#allocation17 + $0x4d8] sm:$0xff]
      %v927 = vld [vmem:[#allocation17 + $0x4e0] sm:$0xff]
      %v928 = vld [vmem:[#allocation17 + $0x4e8] sm:$0xff]
      %v929 = vld [vmem:[#allocation17 + $0x4f0] sm:$0xff]
      %v930 = vld [vmem:[#allocation17 + $0x4f8] sm:$0xff]
      %v931 = vld [vmem:[#allocation17 + $0x500] sm:$0xff]
      %v932 = vld [vmem:[#allocation17 + $0x508] sm:$0xff]
      %v933 = vld [vmem:[#allocation17 + $0x510] sm:$0xff]
      %v934 = vld [vmem:[#allocation17 + $0x518] sm:$0xff]
      %v935 = vld [vmem:[#allocation17 + $0x520] sm:$0xff]
      %v936 = vld [vmem:[#allocation17 + $0x528] sm:$0xff]
      %v937 = vld [vmem:[#allocation17 + $0x530] sm:$0xff]
      %v938 = vld [vmem:[#allocation17 + $0x538] sm:$0xff]
      %v939 = vld [vmem:[#allocation17 + $0x540] sm:$0xff]
      %v940 = vld [vmem:[#allocation17 + $0x548] sm:$0xff]
      %v941 = vld [vmem:[#allocation17 + $0x550] sm:$0xff]
      %v942 = vld [vmem:[#allocation17 + $0x558] sm:$0xff]
      %v943 = vld [vmem:[#allocation17 + $0x560] sm:$0xff]
      %v944 = vld [vmem:[#allocation17 + $0x568] sm:$0xff]
      %v945 = vld [vmem:[#allocation17 + $0x570] sm:$0xff]
      %v946 = vld [vmem:[#allocation17 + $0x578] sm:$0xff]
      %v947 = vld [vmem:[#allocation17 + $0x580] sm:$0xff]
      %v948 = vld [vmem:[#allocation17 + $0x588] sm:$0xff]
      %v949 = vld [vmem:[#allocation17 + $0x590] sm:$0xff]
      %v950 = vld [vmem:[#allocation17 + $0x598] sm:$0xff]
      %v951 = vld [vmem:[#allocation17 + $0x5a0] sm:$0xff]
      %v952 = vld [vmem:[#allocation17 + $0x5a8] sm:$0xff]
      %v953 = vld [vmem:[#allocation17 + $0x5b0] sm:$0xff]
      %v954 = vld [vmem:[#allocation17 + $0x5b8] sm:$0xff]
      %v955 = vld [vmem:[#allocation17 + $0x5c0] sm:$0xff]
      %v956 = vld [vmem:[#allocation17 + $0x5c8] sm:$0xff]
      %v957 = vld [vmem:[#allocation17 + $0x5d0] sm:$0xff]
      %v958 = vld [vmem:[#allocation17 + $0x5d8] sm:$0xff]
      %v959 = vld [vmem:[#allocation17 + $0x5e0] sm:$0xff]
      %v960 = vld [vmem:[#allocation17 + $0x5e8] sm:$0xff]
      %v961 = vld [vmem:[#allocation17 + $0x5f0] sm:$0xff]
      %v962 = vld [vmem:[#allocation17 + $0x5f8] sm:$0xff]
      %v963 = vld [vmem:[#allocation17 + $0x600] sm:$0xff]
      %v964 = vld [vmem:[#allocation17 + $0x608] sm:$0xff]
      %v965 = vld [vmem:[#allocation17 + $0x610] sm:$0xff]
      %v966 = vld [vmem:[#allocation17 + $0x618] sm:$0xff]
      %v967 = vld [vmem:[#allocation17 + $0x620] sm:$0xff]
      %v968 = vld [vmem:[#allocation17 + $0x628] sm:$0xff]
      %v969 = vld [vmem:[#allocation17 + $0x630] sm:$0xff]
      %v970 = vld [vmem:[#allocation17 + $0x638] sm:$0xff]
      %v971 = vld [vmem:[#allocation17 + $0x640] sm:$0xff]
      %v972 = vld [vmem:[#allocation17 + $0x648] sm:$0xff]
      %v973 = vld [vmem:[#allocation17 + $0x650] sm:$0xff]
      %v974 = vld [vmem:[#allocation17 + $0x658] sm:$0xff]
      %v975 = vld [vmem:[#allocation17 + $0x660] sm:$0xff]
      %v976 = vld [vmem:[#allocation17 + $0x668] sm:$0xff]
      %v977 = vld [vmem:[#allocation17 + $0x670] sm:$0xff]
      %v978 = vld [vmem:[#allocation17 + $0x678] sm:$0xff]
      %v979 = vld [vmem:[#allocation17 + $0x680] sm:$0xff]
      %v980 = vld [vmem:[#allocation17 + $0x688] sm:$0xff]
      %v981 = vld [vmem:[#allocation17 + $0x690] sm:$0xff]
      %v982 = vld [vmem:[#allocation17 + $0x698] sm:$0xff]
      %v983 = vld [vmem:[#allocation17 + $0x6a0] sm:$0xff]
      %v984 = vld [vmem:[#allocation17 + $0x6a8] sm:$0xff]
      %v985 = vld [vmem:[#allocation17 + $0x6b0] sm:$0xff]
      %v986 = vld [vmem:[#allocation17 + $0x6b8] sm:$0xff]
      %v987 = vld [vmem:[#allocation17 + $0x6c0] sm:$0xff]
      %v988 = vld [vmem:[#allocation17 + $0x6c8] sm:$0xff]
      %v989 = vld [vmem:[#allocation17 + $0x6d0] sm:$0xff]
      %v990 = vld [vmem:[#allocation17 + $0x6d8] sm:$0xff]
      %v991 = vld [vmem:[#allocation17 + $0x6e0] sm:$0xff]
      %v992 = vld [vmem:[#allocation17 + $0x6e8] sm:$0xff]
      %v993 = vld [vmem:[#allocation17 + $0x6f0] sm:$0xff]
      %v994 = vld [vmem:[#allocation17 + $0x6f8] sm:$0xff]
      %v995 = vld [vmem:[#allocation17 + $0x700] sm:$0xff]
      %v996 = vld [vmem:[#allocation17 + $0x708] sm:$0xff]
      %v997 = vld [vmem:[#allocation17 + $0x710] sm:$0xff]
      %v998 = vld [vmem:[#allocation17 + $0x718] sm:$0xff]
      %v999 = vld [vmem:[#allocation17 + $0x720] sm:$0xff]
      %v1000 = vld [vmem:[#allocation17 + $0x728] sm:$0xff]
      %v1001 = vld [vmem:[#allocation17 + $0x730] sm:$0xff]
      %v1002 = vld [vmem:[#allocation17 + $0x738] sm:$0xff]
      %v1003 = vld [vmem:[#allocation17 + $0x740] sm:$0xff]
      %v1004 = vld [vmem:[#allocation17 + $0x748] sm:$0xff]
      %v1005 = vld [vmem:[#allocation17 + $0x750] sm:$0xff]
      %v1006 = vld [vmem:[#allocation17 + $0x758] sm:$0xff]
      %v1007 = vld [vmem:[#allocation17 + $0x760] sm:$0xff]
      %v1008 = vld [vmem:[#allocation17 + $0x768] sm:$0xff]
      %v1009 = vld [vmem:[#allocation17 + $0x770] sm:$0xff]
      %v1010 = vld [vmem:[#allocation17 + $0x778] sm:$0xff]
      %v1011 = vld [vmem:[#allocation17 + $0x780] sm:$0xff]
      %v1012 = vld [vmem:[#allocation17 + $0x788] sm:$0xff]
      %v1013 = vld [vmem:[#allocation17 + $0x790] sm:$0xff]
      %v1014 = vld [vmem:[#allocation17 + $0x798] sm:$0xff]
      %v1015 = vld [vmem:[#allocation17 + $0x7a0] sm:$0xff]
      %v1016 = vld [vmem:[#allocation17 + $0x7a8] sm:$0xff]
      %v1017 = vld [vmem:[#allocation17 + $0x7b0] sm:$0xff]
      %v1018 = vld [vmem:[#allocation17 + $0x7b8] sm:$0xff]
      %v1019 = vld [vmem:[#allocation17 + $0x7c0] sm:$0xff]
      %v1020 = vld [vmem:[#allocation17 + $0x7c8] sm:$0xff]
      %v1021 = vld [vmem:[#allocation17 + $0x7d0] sm:$0xff]
      %v1022 = vld [vmem:[#allocation17 + $0x7d8] sm:$0xff]
      %v1023 = vld [vmem:[#allocation17 + $0x7e0] sm:$0xff]
      %v1024 = vld [vmem:[#allocation17 + $0x7e8] sm:$0xff]
      %v1025 = vld [vmem:[#allocation17 + $0x7f0] sm:$0xff]
      %v1026 = vld [vmem:[#allocation17 + $0x7f8] sm:$0xff]
      %1027 = vmatpush.msra.mxu0 %v914
      %1028 = vmatpush.msra.mxu0 %v913
      %1029 = vmatpush.msra.mxu0 %v912
      %1030 = vmatpush.msra.mxu0 %v911
      %1031 = vmatpush.msra.mxu0 %v910
      %1032 = vmatpush.msra.mxu0 %v909
      %1033 = vmatpush.msra.mxu0 %v908
      %1034 = vmatpush.msra.mxu0 %v907
      %1035 = vmatpush.msra.mxu0 %v906
      %1036 = vmatpush.msra.mxu0 %v905
      %1037 = vmatpush.msra.mxu0 %v904
      %1038 = vmatpush.msra.mxu0 %v903
      %1039 = vmatpush.msra.mxu0 %v902
      %1040 = vmatpush.msra.mxu0 %v901
      %1041 = vmatpush.msra.mxu0 %v900
      %1042 = vmatpush.msra.mxu0 %v899
      %1043 = vmatmul.f32.gmra.mxu0 %v891
      %v1044 = vpop.f32.mrf.mxu0
      %v1045 = vadd.f32 0.0, %v1044
      %1046 = vdwg.mxu0
      %1047 = vmatpush.msra.mxu0 %v930
      %1048 = vmatpush.msra.mxu0 %v929
      %1049 = vmatpush.msra.mxu0 %v928
      %1050 = vmatpush.msra.mxu0 %v927
      %1051 = vmatpush.msra.mxu0 %v926
      %1052 = vmatpush.msra.mxu0 %v925
      %1053 = vmatpush.msra.mxu0 %v924
      %1054 = vmatpush.msra.mxu0 %v923
      %1055 = vmatpush.msra.mxu0 %v922
      %1056 = vmatpush.msra.mxu0 %v921
      %1057 = vmatpush.msra.mxu0 %v920
      %1058 = vmatpush.msra.mxu0 %v919
      %1059 = vmatpush.msra.mxu0 %v918
      %1060 = vmatpush.msra.mxu0 %v917
      %1061 = vmatpush.msra.mxu0 %v916
      %1062 = vmatpush.msra.mxu0 %v915
      %1063 = vmatmul.f32.gmra.mxu0 %v892
      %v1064 = vpop.f32.mrf.mxu0
      %v1065 = vadd.f32 %v1045, %v1064
      %1066 = vdwg.mxu0
      %1067 = vmatpush.msra.mxu0 %v946
      %1068 = vmatpush.msra.mxu0 %v945
      %1069 = vmatpush.msra.mxu0 %v944
      %1070 = vmatpush.msra.mxu0 %v943
      %1071 = vmatpush.msra.mxu0 %v942
      %1072 = vmatpush.msra.mxu0 %v941
      %1073 = vmatpush.msra.mxu0 %v940
      %1074 = vmatpush.msra.mxu0 %v939
      %1075 = vmatpush.msra.mxu0 %v938
      %1076 = vmatpush.msra.mxu0 %v937
      %1077 = vmatpush.msra.mxu0 %v936
      %1078 = vmatpush.msra.mxu0 %v935
      %1079 = vmatpush.msra.mxu0 %v934
      %1080 = vmatpush.msra.mxu0 %v933
      %1081 = vmatpush.msra.mxu0 %v932
      %1082 = vmatpush.msra.mxu0 %v931
      %1083 = vmatmul.f32.gmra.mxu0 %v893
      %v1084 = vpop.f32.mrf.mxu0
      %v1085 = vadd.f32 %v1065, %v1084
      %1086 = vdwg.mxu0
      %1087 = vmatpush.msra.mxu0 %v962
      %1088 = vmatpush.msra.mxu0 %v961
      %1089 = vmatpush.msra.mxu0 %v960
      %1090 = vmatpush.msra.mxu0 %v959
      %1091 = vmatpush.msra.mxu0 %v958
      %1092 = vmatpush.msra.mxu0 %v957
      %1093 = vmatpush.msra.mxu0 %v956
      %1094 = vmatpush.msra.mxu0 %v955
      %1095 = vmatpush.msra.mxu0 %v954
      %1096 = vmatpush.msra.mxu0 %v953
      %1097 = vmatpush.msra.mxu0 %v952
      %1098 = vmatpush.msra.mxu0 %v951
      %1099 = vmatpush.msra.mxu0 %v950
      %1100 = vmatpush.msra.mxu0 %v949
      %1101 = vmatpush.msra.mxu0 %v948
      %1102 = vmatpush.msra.mxu0 %v947
      %1103 = vmatmul.f32.gmra.mxu0 %v894
      %v1104 = vpop.f32.mrf.mxu0
      %v1105 = vadd.f32 %v1085, %v1104
      %1106 = vdwg.mxu0
      %1107 = vmatpush.msra.mxu0 %v978
      %1108 = vmatpush.msra.mxu0 %v977
      %1109 = vmatpush.msra.mxu0 %v976
      %1110 = vmatpush.msra.mxu0 %v975
      %1111 = vmatpush.msra.mxu0 %v974
      %1112 = vmatpush.msra.mxu0 %v973
      %1113 = vmatpush.msra.mxu0 %v972
      %1114 = vmatpush.msra.mxu0 %v971
      %1115 = vmatpush.msra.mxu0 %v970
      %1116 = vmatpush.msra.mxu0 %v969
      %1117 = vmatpush.msra.mxu0 %v968
      %1118 = vmatpush.msra.mxu0 %v967
      %1119 = vmatpush.msra.mxu0 %v966
      %1120 = vmatpush.msra.mxu0 %v965
      %1121 = vmatpush.msra.mxu0 %v964
      %1122 = vmatpush.msra.mxu0 %v963
      %1123 = vmatmul.f32.gmra.mxu0 %v895
      %v1124 = vpop.f32.mrf.mxu0
      %v1125 = vadd.f32 %v1105, %v1124
      %1126 = vdwg.mxu0
      %1127 = vmatpush.msra.mxu0 %v994
      %1128 = vmatpush.msra.mxu0 %v993
      %1129 = vmatpush.msra.mxu0 %v992
      %1130 = vmatpush.msra.mxu0 %v991
      %1131 = vmatpush.msra.mxu0 %v990
      %1132 = vmatpush.msra.mxu0 %v989
      %1133 = vmatpush.msra.mxu0 %v988
      %1134 = vmatpush.msra.mxu0 %v987
      %1135 = vmatpush.msra.mxu0 %v986
      %1136 = vmatpush.msra.mxu0 %v985
      %1137 = vmatpush.msra.mxu0 %v984
      %1138 = vmatpush.msra.mxu0 %v983
      %1139 = vmatpush.msra.mxu0 %v982
      %1140 = vmatpush.msra.mxu0 %v981
      %1141 = vmatpush.msra.mxu0 %v980
      %1142 = vmatpush.msra.mxu0 %v979
      %1143 = vmatmul.f32.gmra.mxu0 %v896
      %v1144 = vpop.f32.mrf.mxu0
      %v1145 = vadd.f32 %v1125, %v1144
      %1146 = vdwg.mxu0
      %1147 = vmatpush.msra.mxu0 %v1010
      %1148 = vmatpush.msra.mxu0 %v1009
      %1149 = vmatpush.msra.mxu0 %v1008
      %1150 = vmatpush.msra.mxu0 %v1007
      %1151 = vmatpush.msra.mxu0 %v1006
      %1152 = vmatpush.msra.mxu0 %v1005
      %1153 = vmatpush.msra.mxu0 %v1004
      %1154 = vmatpush.msra.mxu0 %v1003
      %1155 = vmatpush.msra.mxu0 %v1002
      %1156 = vmatpush.msra.mxu0 %v1001
      %1157 = vmatpush.msra.mxu0 %v1000
      %1158 = vmatpush.msra.mxu0 %v999
      %1159 = vmatpush.msra.mxu0 %v998
      %1160 = vmatpush.msra.mxu0 %v997
      %1161 = vmatpush.msra.mxu0 %v996
      %1162 = vmatpush.msra.mxu0 %v995
      %1163 = vmatmul.f32.gmra.mxu0 %v897
      %v1164 = vpop.f32.mrf.mxu0
      %v1165 = vadd.f32 %v1145, %v1164
      %1166 = vdwg.mxu0
      %1167 = vmatpush.msra.mxu0 %v1026
      %1168 = vmatpush.msra.mxu0 %v1025
      %1169 = vmatpush.msra.mxu0 %v1024
      %1170 = vmatpush.msra.mxu0 %v1023
      %1171 = vmatpush.msra.mxu0 %v1022
      %1172 = vmatpush.msra.mxu0 %v1021
      %1173 = vmatpush.msra.mxu0 %v1020
      %1174 = vmatpush.msra.mxu0 %v1019
      %1175 = vmatpush.msra.mxu0 %v1018
      %1176 = vmatpush.msra.mxu0 %v1017
      %1177 = vmatpush.msra.mxu0 %v1016
      %1178 = vmatpush.msra.mxu0 %v1015
      %1179 = vmatpush.msra.mxu0 %v1014
      %1180 = vmatpush.msra.mxu0 %v1013
      %1181 = vmatpush.msra.mxu0 %v1012
      %1182 = vmatpush.msra.mxu0 %v1011
      %1183 = vmatmul.f32.gmra.mxu0 %v898
      %v1184 = vpop.f32.mrf.mxu0
      %v1185 = vadd.f32 %v1165, %v1184
      %1186 = vdwg.mxu0
      %1187 = vmatpush.msra.mxu0 %v576
      %1188 = vmatpush.msra.mxu0 %v575
      %1189 = vmatpush.msra.mxu0 %v574
      %1190 = vmatpush.msra.mxu0 %v573
      %1191 = vmatpush.msra.mxu0 %v572
      %1192 = vmatpush.msra.mxu0 %v571
      %1193 = vmatpush.msra.mxu0 %v570
      %1194 = vmatpush.msra.mxu0 %v569
      %1195 = vmatpush.msra.mxu0 %v568
      %1196 = vmatpush.msra.mxu0 %v567
      %1197 = vmatpush.msra.mxu0 %v566
      %1198 = vmatpush.msra.mxu0 %v565
      %1199 = vmatpush.msra.mxu0 %v564
      %1200 = vmatpush.msra.mxu0 %v563
      %1201 = vmatpush.msra.mxu0 %v562
      %1202 = vmatpush.msra.mxu0 %v561
      %1203 = vmatmul.f32.gmra.mxu0 %v553
      %v1204 = vpop.f32.mrf.mxu0
      %v1205 = vadd.f32 %v1185, %v1204
      %1206 = vdwg.mxu0
      %1207 = vmatpush.msra.mxu0 %v592
      %1208 = vmatpush.msra.mxu0 %v591
      %1209 = vmatpush.msra.mxu0 %v590
      %1210 = vmatpush.msra.mxu0 %v589
      %1211 = vmatpush.msra.mxu0 %v588
      %1212 = vmatpush.msra.mxu0 %v587
      %1213 = vmatpush.msra.mxu0 %v586
      %1214 = vmatpush.msra.mxu0 %v585
      %1215 = vmatpush.msra.mxu0 %v584
      %1216 = vmatpush.msra.mxu0 %v583
      %1217 = vmatpush.msra.mxu0 %v582
      %1218 = vmatpush.msra.mxu0 %v581
      %1219 = vmatpush.msra.mxu0 %v580
      %1220 = vmatpush.msra.mxu0 %v579
      %1221 = vmatpush.msra.mxu0 %v578
      %1222 = vmatpush.msra.mxu0 %v577
      %1223 = vmatmul.f32.gmra.mxu0 %v554
      %v1224 = vpop.f32.mrf.mxu0
      %v1225 = vadd.f32 %v1205, %v1224
      %1226 = vdwg.mxu0
      %1227 = vmatpush.msra.mxu0 %v608
      %1228 = vmatpush.msra.mxu0 %v607
      %1229 = vmatpush.msra.mxu0 %v606
      %1230 = vmatpush.msra.mxu0 %v605
      %1231 = vmatpush.msra.mxu0 %v604
      %1232 = vmatpush.msra.mxu0 %v603
      %1233 = vmatpush.msra.mxu0 %v602
      %1234 = vmatpush.msra.mxu0 %v601
      %1235 = vmatpush.msra.mxu0 %v600
      %1236 = vmatpush.msra.mxu0 %v599
      %1237 = vmatpush.msra.mxu0 %v598
      %1238 = vmatpush.msra.mxu0 %v597
      %1239 = vmatpush.msra.mxu0 %v596
      %1240 = vmatpush.msra.mxu0 %v595
      %1241 = vmatpush.msra.mxu0 %v594
      %1242 = vmatpush.msra.mxu0 %v593
      %1243 = vmatmul.f32.gmra.mxu0 %v555
      %v1244 = vpop.f32.mrf.mxu0
      %v1245 = vadd.f32 %v1225, %v1244
      %1246 = vdwg.mxu0
      %1247 = vmatpush.msra.mxu0 %v624
      %1248 = vmatpush.msra.mxu0 %v623
      %1249 = vmatpush.msra.mxu0 %v622
      %1250 = vmatpush.msra.mxu0 %v621
      %1251 = vmatpush.msra.mxu0 %v620
      %1252 = vmatpush.msra.mxu0 %v619
      %1253 = vmatpush.msra.mxu0 %v618
      %1254 = vmatpush.msra.mxu0 %v617
      %1255 = vmatpush.msra.mxu0 %v616
      %1256 = vmatpush.msra.mxu0 %v615
      %1257 = vmatpush.msra.mxu0 %v614
      %1258 = vmatpush.msra.mxu0 %v613
      %1259 = vmatpush.msra.mxu0 %v612
      %1260 = vmatpush.msra.mxu0 %v611
      %1261 = vmatpush.msra.mxu0 %v610
      %1262 = vmatpush.msra.mxu0 %v609
      %1263 = vmatmul.f32.gmra.mxu0 %v556
      %v1264 = vpop.f32.mrf.mxu0
      %v1265 = vadd.f32 %v1245, %v1264
      %1266 = vdwg.mxu0
      %1267 = vmatpush.msra.mxu0 %v640
      %1268 = vmatpush.msra.mxu0 %v639
      %1269 = vmatpush.msra.mxu0 %v638
      %1270 = vmatpush.msra.mxu0 %v637
      %1271 = vmatpush.msra.mxu0 %v636
      %1272 = vmatpush.msra.mxu0 %v635
      %1273 = vmatpush.msra.mxu0 %v634
      %1274 = vmatpush.msra.mxu0 %v633
      %1275 = vmatpush.msra.mxu0 %v632
      %1276 = vmatpush.msra.mxu0 %v631
      %1277 = vmatpush.msra.mxu0 %v630
      %1278 = vmatpush.msra.mxu0 %v629
      %1279 = vmatpush.msra.mxu0 %v628
      %1280 = vmatpush.msra.mxu0 %v627
      %1281 = vmatpush.msra.mxu0 %v626
      %1282 = vmatpush.msra.mxu0 %v625
      %1283 = vmatmul.f32.gmra.mxu0 %v557
      %v1284 = vpop.f32.mrf.mxu0
      %v1285 = vadd.f32 %v1265, %v1284
      %1286 = vdwg.mxu0
      %1287 = vmatpush.msra.mxu0 %v656
      %1288 = vmatpush.msra.mxu0 %v655
      %1289 = vmatpush.msra.mxu0 %v654
      %1290 = vmatpush.msra.mxu0 %v653
      %1291 = vmatpush.msra.mxu0 %v652
      %1292 = vmatpush.msra.mxu0 %v651
      %1293 = vmatpush.msra.mxu0 %v650
      %1294 = vmatpush.msra.mxu0 %v649
      %1295 = vmatpush.msra.mxu0 %v648
      %1296 = vmatpush.msra.mxu0 %v647
      %1297 = vmatpush.msra.mxu0 %v646
      %1298 = vmatpush.msra.mxu0 %v645
      %1299 = vmatpush.msra.mxu0 %v644
      %1300 = vmatpush.msra.mxu0 %v643
      %1301 = vmatpush.msra.mxu0 %v642
      %1302 = vmatpush.msra.mxu0 %v641
      %1303 = vmatmul.f32.gmra.mxu0 %v558
      %v1304 = vpop.f32.mrf.mxu0
      %v1305 = vadd.f32 %v1285, %v1304
      %1306 = vdwg.mxu0
      %1307 = vmatpush.msra.mxu0 %v672
      %1308 = vmatpush.msra.mxu0 %v671
      %1309 = vmatpush.msra.mxu0 %v670
      %1310 = vmatpush.msra.mxu0 %v669
      %1311 = vmatpush.msra.mxu0 %v668
      %1312 = vmatpush.msra.mxu0 %v667
      %1313 = vmatpush.msra.mxu0 %v666
      %1314 = vmatpush.msra.mxu0 %v665
      %1315 = vmatpush.msra.mxu0 %v664
      %1316 = vmatpush.msra.mxu0 %v663
      %1317 = vmatpush.msra.mxu0 %v662
      %1318 = vmatpush.msra.mxu0 %v661
      %1319 = vmatpush.msra.mxu0 %v660
      %1320 = vmatpush.msra.mxu0 %v659
      %1321 = vmatpush.msra.mxu0 %v658
      %1322 = vmatpush.msra.mxu0 %v657
      %1323 = vmatmul.f32.gmra.mxu0 %v559
      %v1324 = vpop.f32.mrf.mxu0
      %v1325 = vadd.f32 %v1305, %v1324
      %1326 = vdwg.mxu0
      %1327 = vmatpush.msra.mxu0 %v688
      %1328 = vmatpush.msra.mxu0 %v687
      %1329 = vmatpush.msra.mxu0 %v686
      %1330 = vmatpush.msra.mxu0 %v685
      %1331 = vmatpush.msra.mxu0 %v684
      %1332 = vmatpush.msra.mxu0 %v683
      %1333 = vmatpush.msra.mxu0 %v682
      %1334 = vmatpush.msra.mxu0 %v681
      %1335 = vmatpush.msra.mxu0 %v680
      %1336 = vmatpush.msra.mxu0 %v679
      %1337 = vmatpush.msra.mxu0 %v678
      %1338 = vmatpush.msra.mxu0 %v677
      %1339 = vmatpush.msra.mxu0 %v676
      %1340 = vmatpush.msra.mxu0 %v675
      %1341 = vmatpush.msra.mxu0 %v674
      %1342 = vmatpush.msra.mxu0 %v673
      %1343 = vmatmul.f32.gmra.mxu0 %v560
      %v1344 = vpop.f32.mrf.mxu0
      %v1345 = vadd.f32 %v1325, %v1344
      %1346 = vdwg.mxu0
      %v1347 = vld [vmem:[#allocation14 + $0x80] sm:$0xff]
      %v1348 = vld [vmem:[#allocation14 + $0x88] sm:$0xff]
      %v1349 = vld [vmem:[#allocation14 + $0x90] sm:$0xff]
      %v1350 = vld [vmem:[#allocation14 + $0x98] sm:$0xff]
      %v1351 = vld [vmem:[#allocation14 + $0xa0] sm:$0xff]
      %v1352 = vld [vmem:[#allocation14 + $0xa8] sm:$0xff]
      %v1353 = vld [vmem:[#allocation14 + $0xb0] sm:$0xff]
      %v1354 = vld [vmem:[#allocation14 + $0xb8] sm:$0xff]
      %v1355 = vld [vmem:[#allocation14 + $0x180] sm:$0xff]
      %v1356 = vld [vmem:[#allocation14 + $0x188] sm:$0xff]
      %v1357 = vld [vmem:[#allocation14 + $0x190] sm:$0xff]
      %v1358 = vld [vmem:[#allocation14 + $0x198] sm:$0xff]
      %v1359 = vld [vmem:[#allocation14 + $0x1a0] sm:$0xff]
      %v1360 = vld [vmem:[#allocation14 + $0x1a8] sm:$0xff]
      %v1361 = vld [vmem:[#allocation14 + $0x1b0] sm:$0xff]
      %v1362 = vld [vmem:[#allocation14 + $0x1b8] sm:$0xff]
      %v1363 = vld [vmem:[#allocation14 + $0x280] sm:$0xff]
      %v1364 = vld [vmem:[#allocation14 + $0x288] sm:$0xff]
      %v1365 = vld [vmem:[#allocation14 + $0x290] sm:$0xff]
      %v1366 = vld [vmem:[#allocation14 + $0x298] sm:$0xff]
      %v1367 = vld [vmem:[#allocation14 + $0x2a0] sm:$0xff]
      %v1368 = vld [vmem:[#allocation14 + $0x2a8] sm:$0xff]
      %v1369 = vld [vmem:[#allocation14 + $0x2b0] sm:$0xff]
      %v1370 = vld [vmem:[#allocation14 + $0x2b8] sm:$0xff]
      %v1371 = vld [vmem:[#allocation15 + $0x10] sm:$0xff]
      %v1373 = vperm.slane %v1371, 0
      %v1374 = vperm.slane %v1371, 1
      %v1375 = vperm.slane %v1371, 2
      %v1376 = vperm.slane %v1371, 3
      %v1377 = vperm.slane %v1371, 4
      %v1378 = vperm.slane %v1371, 5
      %v1379 = vperm.slane %v1371, 6
      %v1380 = vperm.slane %v1371, 7
      %1389 = vmatpush.msra.mxu0 0.0
      %1390 = vmatpush.msra.mxu0 0.0
      %1391 = vmatpush.msra.mxu0 0.0
      %1392 = vmatpush.msra.mxu0 0.0
      %1393 = vmatpush.msra.mxu0 0.0
      %1394 = vmatpush.msra.mxu0 0.0
      %1395 = vmatpush.msra.mxu0 0.0
      %1396 = vmatpush.msra.mxu0 0.0
      %1397 = vmatpush.msra.mxu0 0.0
      %1398 = vmatpush.msra.mxu0 0.0
      %1399 = vmatpush.msra.mxu0 0.0
      %1400 = vmatpush.msra.mxu0 0.0
      %1401 = vmatpush.msra.mxu0 0.0
      %1402 = vmatpush.msra.mxu0 %v1363
      %1403 = vmatpush.msra.mxu0 %v1355
      %1404 = vmatpush.msra.mxu0 %v1347
      %1405 = vmatmul.f32.gmra.mxu0 %v391
      %v1406 = vpop.f32.mrf.mxu0
      %v1407 = vadd.f32 %v1373, %v1406
      %1408 = vdwg.mxu0
      %1409 = vmatpush.msra.mxu0 0.0
      %1410 = vmatpush.msra.mxu0 0.0
      %1411 = vmatpush.msra.mxu0 0.0
      %1412 = vmatpush.msra.mxu0 0.0
      %1413 = vmatpush.msra.mxu0 0.0
      %1414 = vmatpush.msra.mxu0 0.0
      %1415 = vmatpush.msra.mxu0 0.0
      %1416 = vmatpush.msra.mxu0 0.0
      %1417 = vmatpush.msra.mxu0 0.0
      %1418 = vmatpush.msra.mxu0 0.0
      %1419 = vmatpush.msra.mxu0 0.0
      %1420 = vmatpush.msra.mxu0 0.0
      %1421 = vmatpush.msra.mxu0 0.0
      %1422 = vmatpush.msra.mxu0 %v1364
      %1423 = vmatpush.msra.mxu0 %v1356
      %1424 = vmatpush.msra.mxu0 %v1348
      %1425 = vmatmul.f32.gmra.mxu0 %v391
      %v1426 = vpop.f32.mrf.mxu0
      %v1427 = vadd.f32 %v1374, %v1426
      %1428 = vdwg.mxu0
      %1429 = vmatpush.msra.mxu0 0.0
      %1430 = vmatpush.msra.mxu0 0.0
      %1431 = vmatpush.msra.mxu0 0.0
      %1432 = vmatpush.msra.mxu0 0.0
      %1433 = vmatpush.msra.mxu0 0.0
      %1434 = vmatpush.msra.mxu0 0.0
      %1435 = vmatpush.msra.mxu0 0.0
      %1436 = vmatpush.msra.mxu0 0.0
      %1437 = vmatpush.msra.mxu0 0.0
      %1438 = vmatpush.msra.mxu0 0.0
      %1439 = vmatpush.msra.mxu0 0.0
      %1440 = vmatpush.msra.mxu0 0.0
      %1441 = vmatpush.msra.mxu0 0.0
      %1442 = vmatpush.msra.mxu0 %v1365
      %1443 = vmatpush.msra.mxu0 %v1357
      %1444 = vmatpush.msra.mxu0 %v1349
      %1445 = vmatmul.f32.gmra.mxu0 %v391
      %v1446 = vpop.f32.mrf.mxu0
      %v1447 = vadd.f32 %v1375, %v1446
      %1448 = vdwg.mxu0
      %1449 = vmatpush.msra.mxu0 0.0
      %1450 = vmatpush.msra.mxu0 0.0
      %1451 = vmatpush.msra.mxu0 0.0
      %1452 = vmatpush.msra.mxu0 0.0
      %1453 = vmatpush.msra.mxu0 0.0
      %1454 = vmatpush.msra.mxu0 0.0
      %1455 = vmatpush.msra.mxu0 0.0
      %1456 = vmatpush.msra.mxu0 0.0
      %1457 = vmatpush.msra.mxu0 0.0
      %1458 = vmatpush.msra.mxu0 0.0
      %1459 = vmatpush.msra.mxu0 0.0
      %1460 = vmatpush.msra.mxu0 0.0
      %1461 = vmatpush.msra.mxu0 0.0
      %1462 = vmatpush.msra.mxu0 %v1366
      %1463 = vmatpush.msra.mxu0 %v1358
      %1464 = vmatpush.msra.mxu0 %v1350
      %1465 = vmatmul.f32.gmra.mxu0 %v391
      %v1466 = vpop.f32.mrf.mxu0
      %v1467 = vadd.f32 %v1376, %v1466
      %1468 = vdwg.mxu0
      %1469 = vmatpush.msra.mxu0 0.0
      %1470 = vmatpush.msra.mxu0 0.0
      %1471 = vmatpush.msra.mxu0 0.0
      %1472 = vmatpush.msra.mxu0 0.0
      %1473 = vmatpush.msra.mxu0 0.0
      %1474 = vmatpush.msra.mxu0 0.0
      %1475 = vmatpush.msra.mxu0 0.0
      %1476 = vmatpush.msra.mxu0 0.0
      %1477 = vmatpush.msra.mxu0 0.0
      %1478 = vmatpush.msra.mxu0 0.0
      %1479 = vmatpush.msra.mxu0 0.0
      %1480 = vmatpush.msra.mxu0 0.0
      %1481 = vmatpush.msra.mxu0 0.0
      %1482 = vmatpush.msra.mxu0 %v1367
      %1483 = vmatpush.msra.mxu0 %v1359
      %1484 = vmatpush.msra.mxu0 %v1351
      %1485 = vmatmul.f32.gmra.mxu0 %v391
      %v1486 = vpop.f32.mrf.mxu0
      %v1487 = vadd.f32 %v1377, %v1486
      %1488 = vdwg.mxu0
      %1489 = vmatpush.msra.mxu0 0.0
      %1490 = vmatpush.msra.mxu0 0.0
      %1491 = vmatpush.msra.mxu0 0.0
      %1492 = vmatpush.msra.mxu0 0.0
      %1493 = vmatpush.msra.mxu0 0.0
      %1494 = vmatpush.msra.mxu0 0.0
      %1495 = vmatpush.msra.mxu0 0.0
      %1496 = vmatpush.msra.mxu0 0.0
      %1497 = vmatpush.msra.mxu0 0.0
      %1498 = vmatpush.msra.mxu0 0.0
      %1499 = vmatpush.msra.mxu0 0.0
      %1500 = vmatpush.msra.mxu0 0.0
      %1501 = vmatpush.msra.mxu0 0.0
      %1502 = vmatpush.msra.mxu0 %v1368
      %1503 = vmatpush.msra.mxu0 %v1360
      %1504 = vmatpush.msra.mxu0 %v1352
      %1505 = vmatmul.f32.gmra.mxu0 %v391
      %v1506 = vpop.f32.mrf.mxu0
      %v1507 = vadd.f32 %v1378, %v1506
      %1508 = vdwg.mxu0
      %1509 = vmatpush.msra.mxu0 0.0
      %1510 = vmatpush.msra.mxu0 0.0
      %1511 = vmatpush.msra.mxu0 0.0
      %1512 = vmatpush.msra.mxu0 0.0
      %1513 = vmatpush.msra.mxu0 0.0
      %1514 = vmatpush.msra.mxu0 0.0
      %1515 = vmatpush.msra.mxu0 0.0
      %1516 = vmatpush.msra.mxu0 0.0
      %1517 = vmatpush.msra.mxu0 0.0
      %1518 = vmatpush.msra.mxu0 0.0
      %1519 = vmatpush.msra.mxu0 0.0
      %1520 = vmatpush.msra.mxu0 0.0
      %1521 = vmatpush.msra.mxu0 0.0
      %1522 = vmatpush.msra.mxu0 %v1369
      %1523 = vmatpush.msra.mxu0 %v1361
      %1524 = vmatpush.msra.mxu0 %v1353
      %1525 = vmatmul.f32.gmra.mxu0 %v391
      %v1526 = vpop.f32.mrf.mxu0
      %v1527 = vadd.f32 %v1379, %v1526
      %1528 = vdwg.mxu0
      %1529 = vmatpush.msra.mxu0 0.0
      %1530 = vmatpush.msra.mxu0 0.0
      %1531 = vmatpush.msra.mxu0 0.0
      %1532 = vmatpush.msra.mxu0 0.0
      %1533 = vmatpush.msra.mxu0 0.0
      %1534 = vmatpush.msra.mxu0 0.0
      %1535 = vmatpush.msra.mxu0 0.0
      %1536 = vmatpush.msra.mxu0 0.0
      %1537 = vmatpush.msra.mxu0 0.0
      %1538 = vmatpush.msra.mxu0 0.0
      %1539 = vmatpush.msra.mxu0 0.0
      %1540 = vmatpush.msra.mxu0 0.0
      %1541 = vmatpush.msra.mxu0 0.0
      %1542 = vmatpush.msra.mxu0 %v1370
      %1543 = vmatpush.msra.mxu0 %v1362
      %1544 = vmatpush.msra.mxu0 %v1354
      %1545 = vmatmul.f32.gmra.mxu0 %v391
      %v1546 = vpop.f32.mrf.mxu0
      %v1547 = vadd.f32 %v1380, %v1546
      %1548 = vdwg.mxu0
      %v1549 = vmax.f32 %v1407, 0.0
      %v1550 = vmax.f32 %v1427, 0.0
      %v1551 = vmax.f32 %v1447, 0.0
      %v1552 = vmax.f32 %v1467, 0.0
      %v1553 = vmax.f32 %v1487, 0.0
      %v1554 = vmax.f32 %v1507, 0.0
      %v1555 = vmax.f32 %v1527, 0.0
      %v1556 = vmax.f32 %v1547, 0.0
      %v1557 = vld [vmem:[#allocation17 + $0x800] sm:$0xff]
      %v1558 = vld [vmem:[#allocation17 + $0x808] sm:$0xff]
      %v1559 = vld [vmem:[#allocation17 + $0x810] sm:$0xff]
      %v1560 = vld [vmem:[#allocation17 + $0x818] sm:$0xff]
      %v1561 = vld [vmem:[#allocation17 + $0x820] sm:$0xff]
      %v1562 = vld [vmem:[#allocation17 + $0x828] sm:$0xff]
      %v1563 = vld [vmem:[#allocation17 + $0x830] sm:$0xff]
      %v1564 = vld [vmem:[#allocation17 + $0x838] sm:$0xff]
      %v1565 = vld [vmem:[#allocation17 + $0x840] sm:$0xff]
      %v1566 = vld [vmem:[#allocation17 + $0x848] sm:$0xff]
      %v1567 = vld [vmem:[#allocation17 + $0x850] sm:$0xff]
      %v1568 = vld [vmem:[#allocation17 + $0x858] sm:$0xff]
      %v1569 = vld [vmem:[#allocation17 + $0x860] sm:$0xff]
      %v1570 = vld [vmem:[#allocation17 + $0x868] sm:$0xff]
      %v1571 = vld [vmem:[#allocation17 + $0x870] sm:$0xff]
      %v1572 = vld [vmem:[#allocation17 + $0x878] sm:$0xff]
      %v1573 = vld [vmem:[#allocation17 + $0x880] sm:$0xff]
      %v1574 = vld [vmem:[#allocation17 + $0x888] sm:$0xff]
      %v1575 = vld [vmem:[#allocation17 + $0x890] sm:$0xff]
      %v1576 = vld [vmem:[#allocation17 + $0x898] sm:$0xff]
      %v1577 = vld [vmem:[#allocation17 + $0x8a0] sm:$0xff]
      %v1578 = vld [vmem:[#allocation17 + $0x8a8] sm:$0xff]
      %v1579 = vld [vmem:[#allocation17 + $0x8b0] sm:$0xff]
      %v1580 = vld [vmem:[#allocation17 + $0x8b8] sm:$0xff]
      %v1581 = vld [vmem:[#allocation17 + $0x8c0] sm:$0xff]
      %v1582 = vld [vmem:[#allocation17 + $0x8c8] sm:$0xff]
      %v1583 = vld [vmem:[#allocation17 + $0x8d0] sm:$0xff]
      %v1584 = vld [vmem:[#allocation17 + $0x8d8] sm:$0xff]
      %v1585 = vld [vmem:[#allocation17 + $0x8e0] sm:$0xff]
      %v1586 = vld [vmem:[#allocation17 + $0x8e8] sm:$0xff]
      %v1587 = vld [vmem:[#allocation17 + $0x8f0] sm:$0xff]
      %v1588 = vld [vmem:[#allocation17 + $0x8f8] sm:$0xff]
      %v1589 = vld [vmem:[#allocation17 + $0x900] sm:$0xff]
      %v1590 = vld [vmem:[#allocation17 + $0x908] sm:$0xff]
      %v1591 = vld [vmem:[#allocation17 + $0x910] sm:$0xff]
      %v1592 = vld [vmem:[#allocation17 + $0x918] sm:$0xff]
      %v1593 = vld [vmem:[#allocation17 + $0x920] sm:$0xff]
      %v1594 = vld [vmem:[#allocation17 + $0x928] sm:$0xff]
      %v1595 = vld [vmem:[#allocation17 + $0x930] sm:$0xff]
      %v1596 = vld [vmem:[#allocation17 + $0x938] sm:$0xff]
      %v1597 = vld [vmem:[#allocation17 + $0x940] sm:$0xff]
      %v1598 = vld [vmem:[#allocation17 + $0x948] sm:$0xff]
      %v1599 = vld [vmem:[#allocation17 + $0x950] sm:$0xff]
      %v1600 = vld [vmem:[#allocation17 + $0x958] sm:$0xff]
      %v1601 = vld [vmem:[#allocation17 + $0x960] sm:$0xff]
      %v1602 = vld [vmem:[#allocation17 + $0x968] sm:$0xff]
      %v1603 = vld [vmem:[#allocation17 + $0x970] sm:$0xff]
      %v1604 = vld [vmem:[#allocation17 + $0x978] sm:$0xff]
      %v1605 = vld [vmem:[#allocation17 + $0x980] sm:$0xff]
      %v1606 = vld [vmem:[#allocation17 + $0x988] sm:$0xff]
      %v1607 = vld [vmem:[#allocation17 + $0x990] sm:$0xff]
      %v1608 = vld [vmem:[#allocation17 + $0x998] sm:$0xff]
      %v1609 = vld [vmem:[#allocation17 + $0x9a0] sm:$0xff]
      %v1610 = vld [vmem:[#allocation17 + $0x9a8] sm:$0xff]
      %v1611 = vld [vmem:[#allocation17 + $0x9b0] sm:$0xff]
      %v1612 = vld [vmem:[#allocation17 + $0x9b8] sm:$0xff]
      %v1613 = vld [vmem:[#allocation17 + $0x9c0] sm:$0xff]
      %v1614 = vld [vmem:[#allocation17 + $0x9c8] sm:$0xff]
      %v1615 = vld [vmem:[#allocation17 + $0x9d0] sm:$0xff]
      %v1616 = vld [vmem:[#allocation17 + $0x9d8] sm:$0xff]
      %v1617 = vld [vmem:[#allocation17 + $0x9e0] sm:$0xff]
      %v1618 = vld [vmem:[#allocation17 + $0x9e8] sm:$0xff]
      %v1619 = vld [vmem:[#allocation17 + $0x9f0] sm:$0xff]
      %v1620 = vld [vmem:[#allocation17 + $0x9f8] sm:$0xff]
      %v1621 = vld [vmem:[#allocation17 + $0xa00] sm:$0xff]
      %v1622 = vld [vmem:[#allocation17 + $0xa08] sm:$0xff]
      %v1623 = vld [vmem:[#allocation17 + $0xa10] sm:$0xff]
      %v1624 = vld [vmem:[#allocation17 + $0xa18] sm:$0xff]
      %v1625 = vld [vmem:[#allocation17 + $0xa20] sm:$0xff]
      %v1626 = vld [vmem:[#allocation17 + $0xa28] sm:$0xff]
      %v1627 = vld [vmem:[#allocation17 + $0xa30] sm:$0xff]
      %v1628 = vld [vmem:[#allocation17 + $0xa38] sm:$0xff]
      %v1629 = vld [vmem:[#allocation17 + $0xa40] sm:$0xff]
      %v1630 = vld [vmem:[#allocation17 + $0xa48] sm:$0xff]
      %v1631 = vld [vmem:[#allocation17 + $0xa50] sm:$0xff]
      %v1632 = vld [vmem:[#allocation17 + $0xa58] sm:$0xff]
      %v1633 = vld [vmem:[#allocation17 + $0xa60] sm:$0xff]
      %v1634 = vld [vmem:[#allocation17 + $0xa68] sm:$0xff]
      %v1635 = vld [vmem:[#allocation17 + $0xa70] sm:$0xff]
      %v1636 = vld [vmem:[#allocation17 + $0xa78] sm:$0xff]
      %v1637 = vld [vmem:[#allocation17 + $0xa80] sm:$0xff]
      %v1638 = vld [vmem:[#allocation17 + $0xa88] sm:$0xff]
      %v1639 = vld [vmem:[#allocation17 + $0xa90] sm:$0xff]
      %v1640 = vld [vmem:[#allocation17 + $0xa98] sm:$0xff]
      %v1641 = vld [vmem:[#allocation17 + $0xaa0] sm:$0xff]
      %v1642 = vld [vmem:[#allocation17 + $0xaa8] sm:$0xff]
      %v1643 = vld [vmem:[#allocation17 + $0xab0] sm:$0xff]
      %v1644 = vld [vmem:[#allocation17 + $0xab8] sm:$0xff]
      %v1645 = vld [vmem:[#allocation17 + $0xac0] sm:$0xff]
      %v1646 = vld [vmem:[#allocation17 + $0xac8] sm:$0xff]
      %v1647 = vld [vmem:[#allocation17 + $0xad0] sm:$0xff]
      %v1648 = vld [vmem:[#allocation17 + $0xad8] sm:$0xff]
      %v1649 = vld [vmem:[#allocation17 + $0xae0] sm:$0xff]
      %v1650 = vld [vmem:[#allocation17 + $0xae8] sm:$0xff]
      %v1651 = vld [vmem:[#allocation17 + $0xaf0] sm:$0xff]
      %v1652 = vld [vmem:[#allocation17 + $0xaf8] sm:$0xff]
      %v1653 = vld [vmem:[#allocation17 + $0xb00] sm:$0xff]
      %v1654 = vld [vmem:[#allocation17 + $0xb08] sm:$0xff]
      %v1655 = vld [vmem:[#allocation17 + $0xb10] sm:$0xff]
      %v1656 = vld [vmem:[#allocation17 + $0xb18] sm:$0xff]
      %v1657 = vld [vmem:[#allocation17 + $0xb20] sm:$0xff]
      %v1658 = vld [vmem:[#allocation17 + $0xb28] sm:$0xff]
      %v1659 = vld [vmem:[#allocation17 + $0xb30] sm:$0xff]
      %v1660 = vld [vmem:[#allocation17 + $0xb38] sm:$0xff]
      %v1661 = vld [vmem:[#allocation17 + $0xb40] sm:$0xff]
      %v1662 = vld [vmem:[#allocation17 + $0xb48] sm:$0xff]
      %v1663 = vld [vmem:[#allocation17 + $0xb50] sm:$0xff]
      %v1664 = vld [vmem:[#allocation17 + $0xb58] sm:$0xff]
      %v1665 = vld [vmem:[#allocation17 + $0xb60] sm:$0xff]
      %v1666 = vld [vmem:[#allocation17 + $0xb68] sm:$0xff]
      %v1667 = vld [vmem:[#allocation17 + $0xb70] sm:$0xff]
      %v1668 = vld [vmem:[#allocation17 + $0xb78] sm:$0xff]
      %v1669 = vld [vmem:[#allocation17 + $0xb80] sm:$0xff]
      %v1670 = vld [vmem:[#allocation17 + $0xb88] sm:$0xff]
      %v1671 = vld [vmem:[#allocation17 + $0xb90] sm:$0xff]
      %v1672 = vld [vmem:[#allocation17 + $0xb98] sm:$0xff]
      %v1673 = vld [vmem:[#allocation17 + $0xba0] sm:$0xff]
      %v1674 = vld [vmem:[#allocation17 + $0xba8] sm:$0xff]
      %v1675 = vld [vmem:[#allocation17 + $0xbb0] sm:$0xff]
      %v1676 = vld [vmem:[#allocation17 + $0xbb8] sm:$0xff]
      %v1677 = vld [vmem:[#allocation17 + $0xbc0] sm:$0xff]
      %v1678 = vld [vmem:[#allocation17 + $0xbc8] sm:$0xff]
      %v1679 = vld [vmem:[#allocation17 + $0xbd0] sm:$0xff]
      %v1680 = vld [vmem:[#allocation17 + $0xbd8] sm:$0xff]
      %v1681 = vld [vmem:[#allocation17 + $0xbe0] sm:$0xff]
      %v1682 = vld [vmem:[#allocation17 + $0xbe8] sm:$0xff]
      %v1683 = vld [vmem:[#allocation17 + $0xbf0] sm:$0xff]
      %v1684 = vld [vmem:[#allocation17 + $0xbf8] sm:$0xff]
      %1685 = vmatpush.msra.mxu0 %v1572
      %1686 = vmatpush.msra.mxu0 %v1571
      %1687 = vmatpush.msra.mxu0 %v1570
      %1688 = vmatpush.msra.mxu0 %v1569
      %1689 = vmatpush.msra.mxu0 %v1568
      %1690 = vmatpush.msra.mxu0 %v1567
      %1691 = vmatpush.msra.mxu0 %v1566
      %1692 = vmatpush.msra.mxu0 %v1565
      %1693 = vmatpush.msra.mxu0 %v1564
      %1694 = vmatpush.msra.mxu0 %v1563
      %1695 = vmatpush.msra.mxu0 %v1562
      %1696 = vmatpush.msra.mxu0 %v1561
      %1697 = vmatpush.msra.mxu0 %v1560
      %1698 = vmatpush.msra.mxu0 %v1559
      %1699 = vmatpush.msra.mxu0 %v1558
      %1700 = vmatpush.msra.mxu0 %v1557
      %1701 = vmatmul.f32.gmra.mxu0 %v1549
      %v1702 = vpop.f32.mrf.mxu0
      %v1703 = vadd.f32 0.0, %v1702
      %1704 = vdwg.mxu0
      %1705 = vmatpush.msra.mxu0 %v1588
      %1706 = vmatpush.msra.mxu0 %v1587
      %1707 = vmatpush.msra.mxu0 %v1586
      %1708 = vmatpush.msra.mxu0 %v1585
      %1709 = vmatpush.msra.mxu0 %v1584
      %1710 = vmatpush.msra.mxu0 %v1583
      %1711 = vmatpush.msra.mxu0 %v1582
      %1712 = vmatpush.msra.mxu0 %v1581
      %1713 = vmatpush.msra.mxu0 %v1580
      %1714 = vmatpush.msra.mxu0 %v1579
      %1715 = vmatpush.msra.mxu0 %v1578
      %1716 = vmatpush.msra.mxu0 %v1577
      %1717 = vmatpush.msra.mxu0 %v1576
      %1718 = vmatpush.msra.mxu0 %v1575
      %1719 = vmatpush.msra.mxu0 %v1574
      %1720 = vmatpush.msra.mxu0 %v1573
      %1721 = vmatmul.f32.gmra.mxu0 %v1550
      %v1722 = vpop.f32.mrf.mxu0
      %v1723 = vadd.f32 %v1703, %v1722
      %1724 = vdwg.mxu0
      %1725 = vmatpush.msra.mxu0 %v1604
      %1726 = vmatpush.msra.mxu0 %v1603
      %1727 = vmatpush.msra.mxu0 %v1602
      %1728 = vmatpush.msra.mxu0 %v1601
      %1729 = vmatpush.msra.mxu0 %v1600
      %1730 = vmatpush.msra.mxu0 %v1599
      %1731 = vmatpush.msra.mxu0 %v1598
      %1732 = vmatpush.msra.mxu0 %v1597
      %1733 = vmatpush.msra.mxu0 %v1596
      %1734 = vmatpush.msra.mxu0 %v1595
      %1735 = vmatpush.msra.mxu0 %v1594
      %1736 = vmatpush.msra.mxu0 %v1593
      %1737 = vmatpush.msra.mxu0 %v1592
      %1738 = vmatpush.msra.mxu0 %v1591
      %1739 = vmatpush.msra.mxu0 %v1590
      %1740 = vmatpush.msra.mxu0 %v1589
      %1741 = vmatmul.f32.gmra.mxu0 %v1551
      %v1742 = vpop.f32.mrf.mxu0
      %v1743 = vadd.f32 %v1723, %v1742
      %1744 = vdwg.mxu0
      %1745 = vmatpush.msra.mxu0 %v1620
      %1746 = vmatpush.msra.mxu0 %v1619
      %1747 = vmatpush.msra.mxu0 %v1618
      %1748 = vmatpush.msra.mxu0 %v1617
      %1749 = vmatpush.msra.mxu0 %v1616
      %1750 = vmatpush.msra.mxu0 %v1615
      %1751 = vmatpush.msra.mxu0 %v1614
      %1752 = vmatpush.msra.mxu0 %v1613
      %1753 = vmatpush.msra.mxu0 %v1612
      %1754 = vmatpush.msra.mxu0 %v1611
      %1755 = vmatpush.msra.mxu0 %v1610
      %1756 = vmatpush.msra.mxu0 %v1609
      %1757 = vmatpush.msra.mxu0 %v1608
      %1758 = vmatpush.msra.mxu0 %v1607
      %1759 = vmatpush.msra.mxu0 %v1606
      %1760 = vmatpush.msra.mxu0 %v1605
      %1761 = vmatmul.f32.gmra.mxu0 %v1552
      %v1762 = vpop.f32.mrf.mxu0
      %v1763 = vadd.f32 %v1743, %v1762
      %1764 = vdwg.mxu0
      %1765 = vmatpush.msra.mxu0 %v1636
      %1766 = vmatpush.msra.mxu0 %v1635
      %1767 = vmatpush.msra.mxu0 %v1634
      %1768 = vmatpush.msra.mxu0 %v1633
      %1769 = vmatpush.msra.mxu0 %v1632
      %1770 = vmatpush.msra.mxu0 %v1631
      %1771 = vmatpush.msra.mxu0 %v1630
      %1772 = vmatpush.msra.mxu0 %v1629
      %1773 = vmatpush.msra.mxu0 %v1628
      %1774 = vmatpush.msra.mxu0 %v1627
      %1775 = vmatpush.msra.mxu0 %v1626
      %1776 = vmatpush.msra.mxu0 %v1625
      %1777 = vmatpush.msra.mxu0 %v1624
      %1778 = vmatpush.msra.mxu0 %v1623
      %1779 = vmatpush.msra.mxu0 %v1622
      %1780 = vmatpush.msra.mxu0 %v1621
      %1781 = vmatmul.f32.gmra.mxu0 %v1553
      %v1782 = vpop.f32.mrf.mxu0
      %v1783 = vadd.f32 %v1763, %v1782
      %1784 = vdwg.mxu0
      %1785 = vmatpush.msra.mxu0 %v1652
      %1786 = vmatpush.msra.mxu0 %v1651
      %1787 = vmatpush.msra.mxu0 %v1650
      %1788 = vmatpush.msra.mxu0 %v1649
      %1789 = vmatpush.msra.mxu0 %v1648
      %1790 = vmatpush.msra.mxu0 %v1647
      %1791 = vmatpush.msra.mxu0 %v1646
      %1792 = vmatpush.msra.mxu0 %v1645
      %1793 = vmatpush.msra.mxu0 %v1644
      %1794 = vmatpush.msra.mxu0 %v1643
      %1795 = vmatpush.msra.mxu0 %v1642
      %1796 = vmatpush.msra.mxu0 %v1641
      %1797 = vmatpush.msra.mxu0 %v1640
      %1798 = vmatpush.msra.mxu0 %v1639
      %1799 = vmatpush.msra.mxu0 %v1638
      %1800 = vmatpush.msra.mxu0 %v1637
      %1801 = vmatmul.f32.gmra.mxu0 %v1554
      %v1802 = vpop.f32.mrf.mxu0
      %v1803 = vadd.f32 %v1783, %v1802
      %1804 = vdwg.mxu0
      %1805 = vmatpush.msra.mxu0 %v1668
      %1806 = vmatpush.msra.mxu0 %v1667
      %1807 = vmatpush.msra.mxu0 %v1666
      %1808 = vmatpush.msra.mxu0 %v1665
      %1809 = vmatpush.msra.mxu0 %v1664
      %1810 = vmatpush.msra.mxu0 %v1663
      %1811 = vmatpush.msra.mxu0 %v1662
      %1812 = vmatpush.msra.mxu0 %v1661
      %1813 = vmatpush.msra.mxu0 %v1660
      %1814 = vmatpush.msra.mxu0 %v1659
      %1815 = vmatpush.msra.mxu0 %v1658
      %1816 = vmatpush.msra.mxu0 %v1657
      %1817 = vmatpush.msra.mxu0 %v1656
      %1818 = vmatpush.msra.mxu0 %v1655
      %1819 = vmatpush.msra.mxu0 %v1654
      %1820 = vmatpush.msra.mxu0 %v1653
      %1821 = vmatmul.f32.gmra.mxu0 %v1555
      %v1822 = vpop.f32.mrf.mxu0
      %v1823 = vadd.f32 %v1803, %v1822
      %1824 = vdwg.mxu0
      %1825 = vmatpush.msra.mxu0 %v1684
      %1826 = vmatpush.msra.mxu0 %v1683
      %1827 = vmatpush.msra.mxu0 %v1682
      %1828 = vmatpush.msra.mxu0 %v1681
      %1829 = vmatpush.msra.mxu0 %v1680
      %1830 = vmatpush.msra.mxu0 %v1679
      %1831 = vmatpush.msra.mxu0 %v1678
      %1832 = vmatpush.msra.mxu0 %v1677
      %1833 = vmatpush.msra.mxu0 %v1676
      %1834 = vmatpush.msra.mxu0 %v1675
      %1835 = vmatpush.msra.mxu0 %v1674
      %1836 = vmatpush.msra.mxu0 %v1673
      %1837 = vmatpush.msra.mxu0 %v1672
      %1838 = vmatpush.msra.mxu0 %v1671
      %1839 = vmatpush.msra.mxu0 %v1670
      %1840 = vmatpush.msra.mxu0 %v1669
      %1841 = vmatmul.f32.gmra.mxu0 %v1556
      %v1842 = vpop.f32.mrf.mxu0
      %v1843 = vadd.f32 %v1823, %v1842
      %1844 = vdwg.mxu0
      %v1845 = vadd.f32 %v1345, %v1843
      %v1846 = vld [vmem:[#allocation14 + $0xc0] sm:$0xff]
      %v1847 = vld [vmem:[#allocation14 + $0xc8] sm:$0xff]
      %v1848 = vld [vmem:[#allocation14 + $0xd0] sm:$0xff]
      %v1849 = vld [vmem:[#allocation14 + $0xd8] sm:$0xff]
      %v1850 = vld [vmem:[#allocation14 + $0xe0] sm:$0xff]
      %v1851 = vld [vmem:[#allocation14 + $0xe8] sm:$0xff]
      %v1852 = vld [vmem:[#allocation14 + $0xf0] sm:$0xff]
      %v1853 = vld [vmem:[#allocation14 + $0xf8] sm:$0xff]
      %v1854 = vld [vmem:[#allocation14 + $0x1c0] sm:$0xff]
      %v1855 = vld [vmem:[#allocation14 + $0x1c8] sm:$0xff]
      %v1856 = vld [vmem:[#allocation14 + $0x1d0] sm:$0xff]
      %v1857 = vld [vmem:[#allocation14 + $0x1d8] sm:$0xff]
      %v1858 = vld [vmem:[#allocation14 + $0x1e0] sm:$0xff]
      %v1859 = vld [vmem:[#allocation14 + $0x1e8] sm:$0xff]
      %v1860 = vld [vmem:[#allocation14 + $0x1f0] sm:$0xff]
      %v1861 = vld [vmem:[#allocation14 + $0x1f8] sm:$0xff]
      %v1862 = vld [vmem:[#allocation14 + $0x2c0] sm:$0xff]
      %v1863 = vld [vmem:[#allocation14 + $0x2c8] sm:$0xff]
      %v1864 = vld [vmem:[#allocation14 + $0x2d0] sm:$0xff]
      %v1865 = vld [vmem:[#allocation14 + $0x2d8] sm:$0xff]
      %v1866 = vld [vmem:[#allocation14 + $0x2e0] sm:$0xff]
      %v1867 = vld [vmem:[#allocation14 + $0x2e8] sm:$0xff]
      %v1868 = vld [vmem:[#allocation14 + $0x2f0] sm:$0xff]
      %v1869 = vld [vmem:[#allocation14 + $0x2f8] sm:$0xff]
      %v1870 = vld [vmem:[#allocation15 + $0x18] sm:$0xff]
      %v1872 = vperm.slane %v1870, 0
      %v1873 = vperm.slane %v1870, 1
      %v1874 = vperm.slane %v1870, 2
      %v1875 = vperm.slane %v1870, 3
      %v1876 = vperm.slane %v1870, 4
      %v1877 = vperm.slane %v1870, 5
      %v1878 = vperm.slane %v1870, 6
      %v1879 = vperm.slane %v1870, 7
      %1888 = vmatpush.msra.mxu0 0.0
      %1889 = vmatpush.msra.mxu0 0.0
      %1890 = vmatpush.msra.mxu0 0.0
      %1891 = vmatpush.msra.mxu0 0.0
      %1892 = vmatpush.msra.mxu0 0.0
      %1893 = vmatpush.msra.mxu0 0.0
      %1894 = vmatpush.msra.mxu0 0.0
      %1895 = vmatpush.msra.mxu0 0.0
      %1896 = vmatpush.msra.mxu0 0.0
      %1897 = vmatpush.msra.mxu0 0.0
      %1898 = vmatpush.msra.mxu0 0.0
      %1899 = vmatpush.msra.mxu0 0.0
      %1900 = vmatpush.msra.mxu0 0.0
      %1901 = vmatpush.msra.mxu0 %v1862
      %1902 = vmatpush.msra.mxu0 %v1854
      %1903 = vmatpush.msra.mxu0 %v1846
      %1904 = vmatmul.f32.gmra.mxu0 %v391
      %v1905 = vpop.f32.mrf.mxu0
      %v1906 = vadd.f32 %v1872, %v1905
      %1907 = vdwg.mxu0
      %1908 = vmatpush.msra.mxu0 0.0
      %1909 = vmatpush.msra.mxu0 0.0
      %1910 = vmatpush.msra.mxu0 0.0
      %1911 = vmatpush.msra.mxu0 0.0
      %1912 = vmatpush.msra.mxu0 0.0
      %1913 = vmatpush.msra.mxu0 0.0
      %1914 = vmatpush.msra.mxu0 0.0
      %1915 = vmatpush.msra.mxu0 0.0
      %1916 = vmatpush.msra.mxu0 0.0
      %1917 = vmatpush.msra.mxu0 0.0
      %1918 = vmatpush.msra.mxu0 0.0
      %1919 = vmatpush.msra.mxu0 0.0
      %1920 = vmatpush.msra.mxu0 0.0
      %1921 = vmatpush.msra.mxu0 %v1863
      %1922 = vmatpush.msra.mxu0 %v1855
      %1923 = vmatpush.msra.mxu0 %v1847
      %1924 = vmatmul.f32.gmra.mxu0 %v391
      %v1925 = vpop.f32.mrf.mxu0
      %v1926 = vadd.f32 %v1873, %v1925
      %1927 = vdwg.mxu0
      %1928 = vmatpush.msra.mxu0 0.0
      %1929 = vmatpush.msra.mxu0 0.0
      %1930 = vmatpush.msra.mxu0 0.0
      %1931 = vmatpush.msra.mxu0 0.0
      %1932 = vmatpush.msra.mxu0 0.0
      %1933 = vmatpush.msra.mxu0 0.0
      %1934 = vmatpush.msra.mxu0 0.0
      %1935 = vmatpush.msra.mxu0 0.0
      %1936 = vmatpush.msra.mxu0 0.0
      %1937 = vmatpush.msra.mxu0 0.0
      %1938 = vmatpush.msra.mxu0 0.0
      %1939 = vmatpush.msra.mxu0 0.0
      %1940 = vmatpush.msra.mxu0 0.0
      %1941 = vmatpush.msra.mxu0 %v1864
      %1942 = vmatpush.msra.mxu0 %v1856
      %1943 = vmatpush.msra.mxu0 %v1848
      %1944 = vmatmul.f32.gmra.mxu0 %v391
      %v1945 = vpop.f32.mrf.mxu0
      %v1946 = vadd.f32 %v1874, %v1945
      %1947 = vdwg.mxu0
      %1948 = vmatpush.msra.mxu0 0.0
      %1949 = vmatpush.msra.mxu0 0.0
      %1950 = vmatpush.msra.mxu0 0.0
      %1951 = vmatpush.msra.mxu0 0.0
      %1952 = vmatpush.msra.mxu0 0.0
      %1953 = vmatpush.msra.mxu0 0.0
      %1954 = vmatpush.msra.mxu0 0.0
      %1955 = vmatpush.msra.mxu0 0.0
      %1956 = vmatpush.msra.mxu0 0.0
      %1957 = vmatpush.msra.mxu0 0.0
      %1958 = vmatpush.msra.mxu0 0.0
      %1959 = vmatpush.msra.mxu0 0.0
      %1960 = vmatpush.msra.mxu0 0.0
      %1961 = vmatpush.msra.mxu0 %v1865
      %1962 = vmatpush.msra.mxu0 %v1857
      %1963 = vmatpush.msra.mxu0 %v1849
      %1964 = vmatmul.f32.gmra.mxu0 %v391
      %v1965 = vpop.f32.mrf.mxu0
      %v1966 = vadd.f32 %v1875, %v1965
      %1967 = vdwg.mxu0
      %1968 = vmatpush.msra.mxu0 0.0
      %1969 = vmatpush.msra.mxu0 0.0
      %1970 = vmatpush.msra.mxu0 0.0
      %1971 = vmatpush.msra.mxu0 0.0
      %1972 = vmatpush.msra.mxu0 0.0
      %1973 = vmatpush.msra.mxu0 0.0
      %1974 = vmatpush.msra.mxu0 0.0
      %1975 = vmatpush.msra.mxu0 0.0
      %1976 = vmatpush.msra.mxu0 0.0
      %1977 = vmatpush.msra.mxu0 0.0
      %1978 = vmatpush.msra.mxu0 0.0
      %1979 = vmatpush.msra.mxu0 0.0
      %1980 = vmatpush.msra.mxu0 0.0
      %1981 = vmatpush.msra.mxu0 %v1866
      %1982 = vmatpush.msra.mxu0 %v1858
      %1983 = vmatpush.msra.mxu0 %v1850
      %1984 = vmatmul.f32.gmra.mxu0 %v391
      %v1985 = vpop.f32.mrf.mxu0
      %v1986 = vadd.f32 %v1876, %v1985
      %1987 = vdwg.mxu0
      %1988 = vmatpush.msra.mxu0 0.0
      %1989 = vmatpush.msra.mxu0 0.0
      %1990 = vmatpush.msra.mxu0 0.0
      %1991 = vmatpush.msra.mxu0 0.0
      %1992 = vmatpush.msra.mxu0 0.0
      %1993 = vmatpush.msra.mxu0 0.0
      %1994 = vmatpush.msra.mxu0 0.0
      %1995 = vmatpush.msra.mxu0 0.0
      %1996 = vmatpush.msra.mxu0 0.0
      %1997 = vmatpush.msra.mxu0 0.0
      %1998 = vmatpush.msra.mxu0 0.0
      %1999 = vmatpush.msra.mxu0 0.0
      %2000 = vmatpush.msra.mxu0 0.0
      %2001 = vmatpush.msra.mxu0 %v1867
      %2002 = vmatpush.msra.mxu0 %v1859
      %2003 = vmatpush.msra.mxu0 %v1851
      %2004 = vmatmul.f32.gmra.mxu0 %v391
      %v2005 = vpop.f32.mrf.mxu0
      %v2006 = vadd.f32 %v1877, %v2005
      %2007 = vdwg.mxu0
      %2008 = vmatpush.msra.mxu0 0.0
      %2009 = vmatpush.msra.mxu0 0.0
      %2010 = vmatpush.msra.mxu0 0.0
      %2011 = vmatpush.msra.mxu0 0.0
      %2012 = vmatpush.msra.mxu0 0.0
      %2013 = vmatpush.msra.mxu0 0.0
      %2014 = vmatpush.msra.mxu0 0.0
      %2015 = vmatpush.msra.mxu0 0.0
      %2016 = vmatpush.msra.mxu0 0.0
      %2017 = vmatpush.msra.mxu0 0.0
      %2018 = vmatpush.msra.mxu0 0.0
      %2019 = vmatpush.msra.mxu0 0.0
      %2020 = vmatpush.msra.mxu0 0.0
      %2021 = vmatpush.msra.mxu0 %v1868
      %2022 = vmatpush.msra.mxu0 %v1860
      %2023 = vmatpush.msra.mxu0 %v1852
      %2024 = vmatmul.f32.gmra.mxu0 %v391
      %v2025 = vpop.f32.mrf.mxu0
      %v2026 = vadd.f32 %v1878, %v2025
      %2027 = vdwg.mxu0
      %2028 = vmatpush.msra.mxu0 0.0
      %2029 = vmatpush.msra.mxu0 0.0
      %2030 = vmatpush.msra.mxu0 0.0
      %2031 = vmatpush.msra.mxu0 0.0
      %2032 = vmatpush.msra.mxu0 0.0
      %2033 = vmatpush.msra.mxu0 0.0
      %2034 = vmatpush.msra.mxu0 0.0
      %2035 = vmatpush.msra.mxu0 0.0
      %2036 = vmatpush.msra.mxu0 0.0
      %2037 = vmatpush.msra.mxu0 0.0
      %2038 = vmatpush.msra.mxu0 0.0
      %2039 = vmatpush.msra.mxu0 0.0
      %2040 = vmatpush.msra.mxu0 0.0
      %2041 = vmatpush.msra.mxu0 %v1869
      %2042 = vmatpush.msra.mxu0 %v1861
      %2043 = vmatpush.msra.mxu0 %v1853
      %2044 = vmatmul.f32.gmra.mxu0 %v391
      %v2045 = vpop.f32.mrf.mxu0
      %v2046 = vadd.f32 %v1879, %v2045
      %2047 = vdwg.mxu0
      %v2048 = vmax.f32 %v1906, 0.0
      %v2049 = vmax.f32 %v1926, 0.0
      %v2050 = vmax.f32 %v1946, 0.0
      %v2051 = vmax.f32 %v1966, 0.0
      %v2052 = vmax.f32 %v1986, 0.0
      %v2053 = vmax.f32 %v2006, 0.0
      %v2054 = vmax.f32 %v2026, 0.0
      %v2055 = vmax.f32 %v2046, 0.0
      %v2056 = vld [vmem:[#allocation17 + $0xc00] sm:$0xff]
      %v2057 = vld [vmem:[#allocation17 + $0xc08] sm:$0xff]
      %v2058 = vld [vmem:[#allocation17 + $0xc10] sm:$0xff]
      %v2059 = vld [vmem:[#allocation17 + $0xc18] sm:$0xff]
      %v2060 = vld [vmem:[#allocation17 + $0xc20] sm:$0xff]
      %v2061 = vld [vmem:[#allocation17 + $0xc28] sm:$0xff]
      %v2062 = vld [vmem:[#allocation17 + $0xc30] sm:$0xff]
      %v2063 = vld [vmem:[#allocation17 + $0xc38] sm:$0xff]
      %v2064 = vld [vmem:[#allocation17 + $0xc40] sm:$0xff]
      %v2065 = vld [vmem:[#allocation17 + $0xc48] sm:$0xff]
      %v2066 = vld [vmem:[#allocation17 + $0xc50] sm:$0xff]
      %v2067 = vld [vmem:[#allocation17 + $0xc58] sm:$0xff]
      %v2068 = vld [vmem:[#allocation17 + $0xc60] sm:$0xff]
      %v2069 = vld [vmem:[#allocation17 + $0xc68] sm:$0xff]
      %v2070 = vld [vmem:[#allocation17 + $0xc70] sm:$0xff]
      %v2071 = vld [vmem:[#allocation17 + $0xc78] sm:$0xff]
      %v2072 = vld [vmem:[#allocation17 + $0xc80] sm:$0xff]
      %v2073 = vld [vmem:[#allocation17 + $0xc88] sm:$0xff]
      %v2074 = vld [vmem:[#allocation17 + $0xc90] sm:$0xff]
      %v2075 = vld [vmem:[#allocation17 + $0xc98] sm:$0xff]
      %v2076 = vld [vmem:[#allocation17 + $0xca0] sm:$0xff]
      %v2077 = vld [vmem:[#allocation17 + $0xca8] sm:$0xff]
      %v2078 = vld [vmem:[#allocation17 + $0xcb0] sm:$0xff]
      %v2079 = vld [vmem:[#allocation17 + $0xcb8] sm:$0xff]
      %v2080 = vld [vmem:[#allocation17 + $0xcc0] sm:$0xff]
      %v2081 = vld [vmem:[#allocation17 + $0xcc8] sm:$0xff]
      %v2082 = vld [vmem:[#allocation17 + $0xcd0] sm:$0xff]
      %v2083 = vld [vmem:[#allocation17 + $0xcd8] sm:$0xff]
      %v2084 = vld [vmem:[#allocation17 + $0xce0] sm:$0xff]
      %v2085 = vld [vmem:[#allocation17 + $0xce8] sm:$0xff]
      %v2086 = vld [vmem:[#allocation17 + $0xcf0] sm:$0xff]
      %v2087 = vld [vmem:[#allocation17 + $0xcf8] sm:$0xff]
      %v2088 = vld [vmem:[#allocation17 + $0xd00] sm:$0xff]
      %v2089 = vld [vmem:[#allocation17 + $0xd08] sm:$0xff]
      %v2090 = vld [vmem:[#allocation17 + $0xd10] sm:$0xff]
      %v2091 = vld [vmem:[#allocation17 + $0xd18] sm:$0xff]
      %v2092 = vld [vmem:[#allocation17 + $0xd20] sm:$0xff]
      %v2093 = vld [vmem:[#allocation17 + $0xd28] sm:$0xff]
      %v2094 = vld [vmem:[#allocation17 + $0xd30] sm:$0xff]
      %v2095 = vld [vmem:[#allocation17 + $0xd38] sm:$0xff]
      %v2096 = vld [vmem:[#allocation17 + $0xd40] sm:$0xff]
      %v2097 = vld [vmem:[#allocation17 + $0xd48] sm:$0xff]
      %v2098 = vld [vmem:[#allocation17 + $0xd50] sm:$0xff]
      %v2099 = vld [vmem:[#allocation17 + $0xd58] sm:$0xff]
      %v2100 = vld [vmem:[#allocation17 + $0xd60] sm:$0xff]
      %v2101 = vld [vmem:[#allocation17 + $0xd68] sm:$0xff]
      %v2102 = vld [vmem:[#allocation17 + $0xd70] sm:$0xff]
      %v2103 = vld [vmem:[#allocation17 + $0xd78] sm:$0xff]
      %v2104 = vld [vmem:[#allocation17 + $0xd80] sm:$0xff]
      %v2105 = vld [vmem:[#allocation17 + $0xd88] sm:$0xff]
      %v2106 = vld [vmem:[#allocation17 + $0xd90] sm:$0xff]
      %v2107 = vld [vmem:[#allocation17 + $0xd98] sm:$0xff]
      %v2108 = vld [vmem:[#allocation17 + $0xda0] sm:$0xff]
      %v2109 = vld [vmem:[#allocation17 + $0xda8] sm:$0xff]
      %v2110 = vld [vmem:[#allocation17 + $0xdb0] sm:$0xff]
      %v2111 = vld [vmem:[#allocation17 + $0xdb8] sm:$0xff]
      %v2112 = vld [vmem:[#allocation17 + $0xdc0] sm:$0xff]
      %v2113 = vld [vmem:[#allocation17 + $0xdc8] sm:$0xff]
      %v2114 = vld [vmem:[#allocation17 + $0xdd0] sm:$0xff]
      %v2115 = vld [vmem:[#allocation17 + $0xdd8] sm:$0xff]
      %v2116 = vld [vmem:[#allocation17 + $0xde0] sm:$0xff]
      %v2117 = vld [vmem:[#allocation17 + $0xde8] sm:$0xff]
      %v2118 = vld [vmem:[#allocation17 + $0xdf0] sm:$0xff]
      %v2119 = vld [vmem:[#allocation17 + $0xdf8] sm:$0xff]
      %v2120 = vld [vmem:[#allocation17 + $0xe00] sm:$0xff]
      %v2121 = vld [vmem:[#allocation17 + $0xe08] sm:$0xff]
      %v2122 = vld [vmem:[#allocation17 + $0xe10] sm:$0xff]
      %v2123 = vld [vmem:[#allocation17 + $0xe18] sm:$0xff]
      %v2124 = vld [vmem:[#allocation17 + $0xe20] sm:$0xff]
      %v2125 = vld [vmem:[#allocation17 + $0xe28] sm:$0xff]
      %v2126 = vld [vmem:[#allocation17 + $0xe30] sm:$0xff]
      %v2127 = vld [vmem:[#allocation17 + $0xe38] sm:$0xff]
      %v2128 = vld [vmem:[#allocation17 + $0xe40] sm:$0xff]
      %v2129 = vld [vmem:[#allocation17 + $0xe48] sm:$0xff]
      %v2130 = vld [vmem:[#allocation17 + $0xe50] sm:$0xff]
      %v2131 = vld [vmem:[#allocation17 + $0xe58] sm:$0xff]
      %v2132 = vld [vmem:[#allocation17 + $0xe60] sm:$0xff]
      %v2133 = vld [vmem:[#allocation17 + $0xe68] sm:$0xff]
      %v2134 = vld [vmem:[#allocation17 + $0xe70] sm:$0xff]
      %v2135 = vld [vmem:[#allocation17 + $0xe78] sm:$0xff]
      %v2136 = vld [vmem:[#allocation17 + $0xe80] sm:$0xff]
      %v2137 = vld [vmem:[#allocation17 + $0xe88] sm:$0xff]
      %v2138 = vld [vmem:[#allocation17 + $0xe90] sm:$0xff]
      %v2139 = vld [vmem:[#allocation17 + $0xe98] sm:$0xff]
      %v2140 = vld [vmem:[#allocation17 + $0xea0] sm:$0xff]
      %v2141 = vld [vmem:[#allocation17 + $0xea8] sm:$0xff]
      %v2142 = vld [vmem:[#allocation17 + $0xeb0] sm:$0xff]
      %v2143 = vld [vmem:[#allocation17 + $0xeb8] sm:$0xff]
      %v2144 = vld [vmem:[#allocation17 + $0xec0] sm:$0xff]
      %v2145 = vld [vmem:[#allocation17 + $0xec8] sm:$0xff]
      %v2146 = vld [vmem:[#allocation17 + $0xed0] sm:$0xff]
      %v2147 = vld [vmem:[#allocation17 + $0xed8] sm:$0xff]
      %v2148 = vld [vmem:[#allocation17 + $0xee0] sm:$0xff]
      %v2149 = vld [vmem:[#allocation17 + $0xee8] sm:$0xff]
      %v2150 = vld [vmem:[#allocation17 + $0xef0] sm:$0xff]
      %v2151 = vld [vmem:[#allocation17 + $0xef8] sm:$0xff]
      %v2152 = vld [vmem:[#allocation17 + $0xf00] sm:$0xff]
      %v2153 = vld [vmem:[#allocation17 + $0xf08] sm:$0xff]
      %v2154 = vld [vmem:[#allocation17 + $0xf10] sm:$0xff]
      %v2155 = vld [vmem:[#allocation17 + $0xf18] sm:$0xff]
      %v2156 = vld [vmem:[#allocation17 + $0xf20] sm:$0xff]
      %v2157 = vld [vmem:[#allocation17 + $0xf28] sm:$0xff]
      %v2158 = vld [vmem:[#allocation17 + $0xf30] sm:$0xff]
      %v2159 = vld [vmem:[#allocation17 + $0xf38] sm:$0xff]
      %v2160 = vld [vmem:[#allocation17 + $0xf40] sm:$0xff]
      %v2161 = vld [vmem:[#allocation17 + $0xf48] sm:$0xff]
      %v2162 = vld [vmem:[#allocation17 + $0xf50] sm:$0xff]
      %v2163 = vld [vmem:[#allocation17 + $0xf58] sm:$0xff]
      %v2164 = vld [vmem:[#allocation17 + $0xf60] sm:$0xff]
      %v2165 = vld [vmem:[#allocation17 + $0xf68] sm:$0xff]
      %v2166 = vld [vmem:[#allocation17 + $0xf70] sm:$0xff]
      %v2167 = vld [vmem:[#allocation17 + $0xf78] sm:$0xff]
      %v2168 = vld [vmem:[#allocation17 + $0xf80] sm:$0xff]
      %v2169 = vld [vmem:[#allocation17 + $0xf88] sm:$0xff]
      %v2170 = vld [vmem:[#allocation17 + $0xf90] sm:$0xff]
      %v2171 = vld [vmem:[#allocation17 + $0xf98] sm:$0xff]
      %v2172 = vld [vmem:[#allocation17 + $0xfa0] sm:$0xff]
      %v2173 = vld [vmem:[#allocation17 + $0xfa8] sm:$0xff]
      %v2174 = vld [vmem:[#allocation17 + $0xfb0] sm:$0xff]
      %v2175 = vld [vmem:[#allocation17 + $0xfb8] sm:$0xff]
      %v2176 = vld [vmem:[#allocation17 + $0xfc0] sm:$0xff]
      %v2177 = vld [vmem:[#allocation17 + $0xfc8] sm:$0xff]
      %v2178 = vld [vmem:[#allocation17 + $0xfd0] sm:$0xff]
      %v2179 = vld [vmem:[#allocation17 + $0xfd8] sm:$0xff]
      %v2180 = vld [vmem:[#allocation17 + $0xfe0] sm:$0xff]
      %v2181 = vld [vmem:[#allocation17 + $0xfe8] sm:$0xff]
      %v2182 = vld [vmem:[#allocation17 + $0xff0] sm:$0xff]
      %v2183 = vld [vmem:[#allocation17 + $0xff8] sm:$0xff]
      %2184 = vmatpush.msra.mxu0 %v2071
      %2185 = vmatpush.msra.mxu0 %v2070
      %2186 = vmatpush.msra.mxu0 %v2069
      %2187 = vmatpush.msra.mxu0 %v2068
      %2188 = vmatpush.msra.mxu0 %v2067
      %2189 = vmatpush.msra.mxu0 %v2066
      %2190 = vmatpush.msra.mxu0 %v2065
      %2191 = vmatpush.msra.mxu0 %v2064
      %2192 = vmatpush.msra.mxu0 %v2063
      %2193 = vmatpush.msra.mxu0 %v2062
      %2194 = vmatpush.msra.mxu0 %v2061
      %2195 = vmatpush.msra.mxu0 %v2060
      %2196 = vmatpush.msra.mxu0 %v2059
      %2197 = vmatpush.msra.mxu0 %v2058
      %2198 = vmatpush.msra.mxu0 %v2057
      %2199 = vmatpush.msra.mxu0 %v2056
      %2200 = vmatmul.f32.gmra.mxu0 %v2048
      %v2201 = vpop.f32.mrf.mxu0
      %v2202 = vadd.f32 0.0, %v2201
      %2203 = vdwg.mxu0
      %2204 = vmatpush.msra.mxu0 %v2087
      %2205 = vmatpush.msra.mxu0 %v2086
      %2206 = vmatpush.msra.mxu0 %v2085
      %2207 = vmatpush.msra.mxu0 %v2084
      %2208 = vmatpush.msra.mxu0 %v2083
      %2209 = vmatpush.msra.mxu0 %v2082
      %2210 = vmatpush.msra.mxu0 %v2081
      %2211 = vmatpush.msra.mxu0 %v2080
      %2212 = vmatpush.msra.mxu0 %v2079
      %2213 = vmatpush.msra.mxu0 %v2078
      %2214 = vmatpush.msra.mxu0 %v2077
      %2215 = vmatpush.msra.mxu0 %v2076
      %2216 = vmatpush.msra.mxu0 %v2075
      %2217 = vmatpush.msra.mxu0 %v2074
      %2218 = vmatpush.msra.mxu0 %v2073
      %2219 = vmatpush.msra.mxu0 %v2072
      %2220 = vmatmul.f32.gmra.mxu0 %v2049
      %v2221 = vpop.f32.mrf.mxu0
      %v2222 = vadd.f32 %v2202, %v2221
      %2223 = vdwg.mxu0
      %2224 = vmatpush.msra.mxu0 %v2103
      %2225 = vmatpush.msra.mxu0 %v2102
      %2226 = vmatpush.msra.mxu0 %v2101
      %2227 = vmatpush.msra.mxu0 %v2100
      %2228 = vmatpush.msra.mxu0 %v2099
      %2229 = vmatpush.msra.mxu0 %v2098
      %2230 = vmatpush.msra.mxu0 %v2097
      %2231 = vmatpush.msra.mxu0 %v2096
      %2232 = vmatpush.msra.mxu0 %v2095
      %2233 = vmatpush.msra.mxu0 %v2094
      %2234 = vmatpush.msra.mxu0 %v2093
      %2235 = vmatpush.msra.mxu0 %v2092
      %2236 = vmatpush.msra.mxu0 %v2091
      %2237 = vmatpush.msra.mxu0 %v2090
      %2238 = vmatpush.msra.mxu0 %v2089
      %2239 = vmatpush.msra.mxu0 %v2088
      %2240 = vmatmul.f32.gmra.mxu0 %v2050
      %v2241 = vpop.f32.mrf.mxu0
      %v2242 = vadd.f32 %v2222, %v2241
      %2243 = vdwg.mxu0
      %2244 = vmatpush.msra.mxu0 %v2119
      %2245 = vmatpush.msra.mxu0 %v2118
      %2246 = vmatpush.msra.mxu0 %v2117
      %2247 = vmatpush.msra.mxu0 %v2116
      %2248 = vmatpush.msra.mxu0 %v2115
      %2249 = vmatpush.msra.mxu0 %v2114
      %2250 = vmatpush.msra.mxu0 %v2113
      %2251 = vmatpush.msra.mxu0 %v2112
      %2252 = vmatpush.msra.mxu0 %v2111
      %2253 = vmatpush.msra.mxu0 %v2110
      %2254 = vmatpush.msra.mxu0 %v2109
      %2255 = vmatpush.msra.mxu0 %v2108
      %2256 = vmatpush.msra.mxu0 %v2107
      %2257 = vmatpush.msra.mxu0 %v2106
      %2258 = vmatpush.msra.mxu0 %v2105
      %2259 = vmatpush.msra.mxu0 %v2104
      %2260 = vmatmul.f32.gmra.mxu0 %v2051
      %v2261 = vpop.f32.mrf.mxu0
      %v2262 = vadd.f32 %v2242, %v2261
      %2263 = vdwg.mxu0
      %2264 = vmatpush.msra.mxu0 %v2135
      %2265 = vmatpush.msra.mxu0 %v2134
      %2266 = vmatpush.msra.mxu0 %v2133
      %2267 = vmatpush.msra.mxu0 %v2132
      %2268 = vmatpush.msra.mxu0 %v2131
      %2269 = vmatpush.msra.mxu0 %v2130
      %2270 = vmatpush.msra.mxu0 %v2129
      %2271 = vmatpush.msra.mxu0 %v2128
      %2272 = vmatpush.msra.mxu0 %v2127
      %2273 = vmatpush.msra.mxu0 %v2126
      %2274 = vmatpush.msra.mxu0 %v2125
      %2275 = vmatpush.msra.mxu0 %v2124
      %2276 = vmatpush.msra.mxu0 %v2123
      %2277 = vmatpush.msra.mxu0 %v2122
      %2278 = vmatpush.msra.mxu0 %v2121
      %2279 = vmatpush.msra.mxu0 %v2120
      %2280 = vmatmul.f32.gmra.mxu0 %v2052
      %v2281 = vpop.f32.mrf.mxu0
      %v2282 = vadd.f32 %v2262, %v2281
      %2283 = vdwg.mxu0
      %2284 = vmatpush.msra.mxu0 %v2151
      %2285 = vmatpush.msra.mxu0 %v2150
      %2286 = vmatpush.msra.mxu0 %v2149
      %2287 = vmatpush.msra.mxu0 %v2148
      %2288 = vmatpush.msra.mxu0 %v2147
      %2289 = vmatpush.msra.mxu0 %v2146
      %2290 = vmatpush.msra.mxu0 %v2145
      %2291 = vmatpush.msra.mxu0 %v2144
      %2292 = vmatpush.msra.mxu0 %v2143
      %2293 = vmatpush.msra.mxu0 %v2142
      %2294 = vmatpush.msra.mxu0 %v2141
      %2295 = vmatpush.msra.mxu0 %v2140
      %2296 = vmatpush.msra.mxu0 %v2139
      %2297 = vmatpush.msra.mxu0 %v2138
      %2298 = vmatpush.msra.mxu0 %v2137
      %2299 = vmatpush.msra.mxu0 %v2136
      %2300 = vmatmul.f32.gmra.mxu0 %v2053
      %v2301 = vpop.f32.mrf.mxu0
      %v2302 = vadd.f32 %v2282, %v2301
      %2303 = vdwg.mxu0
      %2304 = vmatpush.msra.mxu0 %v2167
      %2305 = vmatpush.msra.mxu0 %v2166
      %2306 = vmatpush.msra.mxu0 %v2165
      %2307 = vmatpush.msra.mxu0 %v2164
      %2308 = vmatpush.msra.mxu0 %v2163
      %2309 = vmatpush.msra.mxu0 %v2162
      %2310 = vmatpush.msra.mxu0 %v2161
      %2311 = vmatpush.msra.mxu0 %v2160
      %2312 = vmatpush.msra.mxu0 %v2159
      %2313 = vmatpush.msra.mxu0 %v2158
      %2314 = vmatpush.msra.mxu0 %v2157
      %2315 = vmatpush.msra.mxu0 %v2156
      %2316 = vmatpush.msra.mxu0 %v2155
      %2317 = vmatpush.msra.mxu0 %v2154
      %2318 = vmatpush.msra.mxu0 %v2153
      %2319 = vmatpush.msra.mxu0 %v2152
      %2320 = vmatmul.f32.gmra.mxu0 %v2054
      %v2321 = vpop.f32.mrf.mxu0
      %v2322 = vadd.f32 %v2302, %v2321
      %2323 = vdwg.mxu0
      %2324 = vmatpush.msra.mxu0 %v2183
      %2325 = vmatpush.msra.mxu0 %v2182
      %2326 = vmatpush.msra.mxu0 %v2181
      %2327 = vmatpush.msra.mxu0 %v2180
      %2328 = vmatpush.msra.mxu0 %v2179
      %2329 = vmatpush.msra.mxu0 %v2178
      %2330 = vmatpush.msra.mxu0 %v2177
      %2331 = vmatpush.msra.mxu0 %v2176
      %2332 = vmatpush.msra.mxu0 %v2175
      %2333 = vmatpush.msra.mxu0 %v2174
      %2334 = vmatpush.msra.mxu0 %v2173
      %2335 = vmatpush.msra.mxu0 %v2172
      %2336 = vmatpush.msra.mxu0 %v2171
      %2337 = vmatpush.msra.mxu0 %v2170
      %2338 = vmatpush.msra.mxu0 %v2169
      %2339 = vmatpush.msra.mxu0 %v2168
      %2340 = vmatmul.f32.gmra.mxu0 %v2055
      %v2341 = vpop.f32.mrf.mxu0
      %v2342 = vadd.f32 %v2322, %v2341
      %2343 = vdwg.mxu0
      %v2344 = vadd.f32 %v1845, %v2342
      %v2345 = vld [vmem:[#allocation18] sm:$0x1]
      %v2347 = vperm.slane %v2345, 0
      %v2349 = vadd.f32 %v2344, %v2347
      %2350 = vst [vmem:[#allocation20] sm:$0x3] %v2349
    $region93: #{tpu_custom_call.1} parent=1 // pred_fallthru
      _
    // Predicated region
    $region94: #{tpu_custom_call.1} parent=1 // pred_check
      _
    $region95: #{tpu_custom_call.1} parent=1 // pred_check_branch
      %2352 = sbr.rel (0) target = $region97
    $region96: #{tpu_custom_call.1} parent=1 // pred_region
      %2354 = vsyncadd [#allocation5], 0
      %s2356 = sshll.u32 [#allocation20], 4
      %s2357 = int_to_ptr.vmem [resolvable:$true] %s2356
      %s2358 = sshll.u32 %s11, 4
      %s2359 = int_to_ptr.hbm [resolvable:$true] %s2358
      %2361 = dma.vmem_to_hbm [thread:$0]  %s2357, 32, %s2359, [#allocation5]
    $region97: #{tpu_custom_call.1} parent=1 // pred_fallthru
      _
    // Predicated region
    $region98: #{tpu_custom_call.1} parent=1 // pred_check
      _
    $region99: #{tpu_custom_call.1} parent=1 // pred_check_branch
      %2363 = sbr.rel (0) target = $region101
    $region100: #{tpu_custom_call.1} parent=1 // pred_region
      %2365 = dma.done [#allocation5], 32
    $region101: #{tpu_custom_call.1} parent=1 // pred_fallthru
      _
    %2366 = vsyncpa [#allocation4], 1
    %2367 = vsyncpa [#allocation7], 1
    %2368 = vsyncpa [#allocation10], 1
    %2369 = vsyncpa [#allocation13], 1
    %2370 = vsyncpa [#allocation16], 1
    %2371 = vsyncpa [#allocation19], 1
    %2372 = vsyncpa [#allocation5], 1

</llo_original>
